<compile_context>
chip_gen: v7x
topology: tpu7x:2x2x1
jax: 0.10.0
libtpu: 0.0.40
codegen_flags: <defaults>
</compile_context>

<pallas_src>
import functools

import jax
import jax.numpy as jnp
from jax.experimental import pallas as pl
from jax.experimental.pallas import tpu as pltpu


def _round_up(x, m):
    return ((x + m - 1) // m) * m


@functools.lru_cache(maxsize=None)
def _vmem_budget_and_limit():
    """Generation-aware VMEM sizing: ~40 MiB budget / 48 MiB limit on v7x (64 MiB
    physical), ~80 MiB / 96 MiB on v5e/v6e (128 MiB physical)."""
    cap = 64 * 1024 * 1024
    try:
        cap = int(pltpu.get_tpu_info().vmem_capacity_bytes)
    except Exception:   # conservative fallback is valid on every generation
        pass
    return (cap * 5) // 8, (cap * 3) // 4


# ----------------------------- Pallas kernels ------------------------------
def _conv_stats_kernel(center_ref, x_ref, w_ref, y_ref, s_ref, ss_ref, *scratch,
                       k_tiles, tk, w_resident):
    """Conv-as-matmul (f32 accumulation) + fused shifted per-channel batch stats.

    Weights are either fully VMEM-resident (w_resident=True, sliced per K step with
    pl.ds) or streamed as (tk, Cp) blocks.  Stats are sums of (y - center) and
    (y - center)^2 over the M tile, written only to sublane 0 of the stat blocks.
    """
    k = pl.program_id(1)

    if w_resident and k_tiles > 1:
        off = pl.multiple_of(k * tk, tk)
        w = w_ref[pl.ds(off, tk), :]
    else:
        w = w_ref[...]
    contrib = jnp.dot(x_ref[...], w, preferred_element_type=jnp.float32)

    def finalize(acc):
        y_ref[...] = acc.astype(y_ref.dtype)
        d = acc - center_ref[...]                              # shifted for stability
        s_ref[0:1, :] = jnp.sum(d, axis=0, keepdims=True)      # sublane 0 only
        ss_ref[0:1, :] = jnp.sum(d * d, axis=0, keepdims=True)

    if k_tiles == 1:
        finalize(contrib)
    else:
        acc_ref = scratch[0]

        @pl.when(k == 0)
        def _():
            acc_ref[...] = contrib        # assign (no zero-fill + add)

        @pl.when(k > 0)
        def _():
            acc_ref[...] += contrib

        @pl.when(k == k_tiles - 1)
        def _():
            finalize(acc_ref[...])


def _bn_relu_nchw_kernel(y_ref, scale_ref, shift_ref, o_ref, *, g, ohw, ohwp):
    """Fused BN-affine + ReLU; transposes g images in-kernel (XLU) so the output lands
    directly in NCHW layout with a lane-dense (128-padded) spatial dim."""
    y = y_ref[...].astype(jnp.float32)                          # (g*ohw, Cp)
    z = jnp.maximum(y * scale_ref[...] + shift_ref[...], 0.0)
    zt = jnp.transpose(z.reshape(g, ohw, -1), (0, 2, 1))        # (g, Cp, ohw)
    if ohwp == ohw:
        o_ref[...] = zt
    else:
        o_ref[:, :, :ohw] = zt            # padded tail lanes are sliced away in glue


def _bn_relu_flat_kernel(y_ref, scale_ref, shift_ref, o_ref):
    y = y_ref[...].astype(jnp.float32)
    o_ref[...] = jnp.maximum(y * scale_ref[...] + shift_ref[...], 0.0)


# --------------------------- tiling heuristics ------------------------------
def _pick_tiles(M, K, OC, in_bytes):
    budget, _ = _vmem_budget_and_limit()
    Cp = _round_up(OC, 128)
    stat_bytes = 2 * 2 * 8 * Cp * 4 + 2 * Cp * 4   # stat outputs + center input

    def workset(tm, tk, k_tiles, w_res, kp):
        w_b = (2 * kp if w_res else 3 * tk) * Cp * in_bytes
        x_b = 2 * tm * tk * in_bytes
        y_b = 2 * tm * Cp * in_bytes
        acc_b = tm * Cp * 4 if k_tiles > 1 else 0
        return w_b + x_b + y_b + acc_b + stat_bytes

    # Preferred: single K step (full-K x tile + resident weights, no scratch acc).
    kp = _round_up(K, 128)
    tk, k_tiles, w_res = kp, 1, True
    tm = None
    for cand in (1024, 512, 256, 128):
        if workset(cand, tk, 1, True, kp) <= budget:
            tm = cand
            break
    if tm is None:
        # Large K: pad K to a multiple of 256 and contract in MXU-native 256 steps.
        kp = _round_up(K, 256)
        tk = 256
        k_tiles = kp // tk
        w_res = (2 * kp * Cp * in_bytes) <= budget // 2
        tm = 128
        for cand in (1024, 512, 256, 128):
            if workset(cand, tk, k_tiles, w_res, kp) <= budget:
                tm = cand
                break
    tm = min(tm, _round_up(max(M, 1), 128))
    # Keep >=2 M tiles when there is enough work so the 'parallel' M axis can shard
    # across the two TensorCores on v7x (harmless on single-TC v5e/v6e).
    if M > 256:
        tm = min(tm, _round_up(-(-M // 2), 128))
    Mp = _round_up(M, tm)
    return Mp, kp, Cp, tm, tk, k_tiles, w_res


def _pick_group(n_img, ohw, cp, y_bytes, budget):
    """Images per pass-2 step; None -> flat fallback path."""
    g = None
    for cand in (1, 2, 4, 8):
        if (cand * ohw) % 8 == 0 and n_img % cand == 0:
            g = cand
            break
    if g is None:
        return None
    ohwp = _round_up(ohw, 128)

    def ws(gg):
        return (2 * gg * ohw * cp * y_bytes + 2 * gg * cp * ohwp * 4
                + 2 * gg * ohw * cp * 4)

    if ws(g) > budget:
        return None
    while (n_img % (g * 2) == 0 and n_img // (g * 2) >= 2
           and ws(g * 2) <= budget and g * 2 * ohw <= 4096):
        g *= 2
    return g


# --------------------------- pallas_call wrappers ---------------------------
def _conv_bn_stats(x_col_p, w_p, center, *, tm, tk, k_tiles, w_resident, y_dtype,
                   vmem_limit):
    Mp, Kp = x_col_p.shape
    Cp = w_p.shape[1]
    m_tiles = Mp // tm
    kernel = functools.partial(_conv_stats_kernel, k_tiles=k_tiles, tk=tk,
                               w_resident=w_resident)
    if w_resident:
        # Constant index_map -> the whole weight is DMA'd once for the entire grid.
        w_spec = pl.BlockSpec((Kp, Cp), lambda i, k: (0, 0))
    else:
        w_spec = pl.BlockSpec((tk, Cp), lambda i, k: (k, 0),
                              pipeline_mode=pl.Buffered(3))
    scratch = [] if k_tiles == 1 else [pltpu.VMEM((tm, Cp), jnp.float32)]
    return pl.pallas_call(
        kernel,
        out_shape=(
            jax.ShapeDtypeStruct((Mp, Cp), y_dtype),               # conv output y
            jax.ShapeDtypeStruct((m_tiles * 8, Cp), jnp.float32),  # per-tile sum(y-c)
            jax.ShapeDtypeStruct((m_tiles * 8, Cp), jnp.float32),  # per-tile sum((y-c)^2)
        ),
        grid_spec=pltpu.PrefetchScalarGridSpec(
            num_scalar_prefetch=0,
            grid=(m_tiles, k_tiles),
            in_specs=[
                pl.BlockSpec((1, Cp), lambda i, k: (0, 0)),        # stats center
                pl.BlockSpec((tm, tk), lambda i, k: (i, k)),       # im2col patches
                w_spec,
            ],
            out_specs=[
                pl.BlockSpec((tm, Cp), lambda i, k: (i, 0)),
                pl.BlockSpec((8, Cp), lambda i, k: (i, 0)),
                pl.BlockSpec((8, Cp), lambda i, k: (i, 0)),
            ],
            scratch_shapes=scratch,
        ),
        compiler_params=pltpu.CompilerParams(
            dimension_semantics=("parallel", "arbitrary"),
            vmem_limit_bytes=vmem_limit),
    )(center, x_col_p, w_p)


def _bn_relu_nchw(y_p, scale, shift, *, n_img, g, ohw, ohwp, vmem_limit):
    Mp, Cp = y_p.shape
    kernel = functools.partial(_bn_relu_nchw_kernel, g=g, ohw=ohw, ohwp=ohwp)
    return pl.pallas_call(
        kernel,
        out_shape=jax.ShapeDtypeStruct((n_img, Cp, ohwp), jnp.float32),
        grid_spec=pltpu.PrefetchScalarGridSpec(
            num_scalar_prefetch=0,
            grid=(n_img // g,),
            in_specs=[
                pl.BlockSpec((g * ohw, Cp), lambda n: (n, 0)),
                pl.BlockSpec((1, Cp), lambda n: (0, 0)),
                pl.BlockSpec((1, Cp), lambda n: (0, 0)),
            ],
            out_specs=pl.BlockSpec((g, Cp, ohwp), lambda n: (n, 0, 0)),
        ),
        compiler_params=pltpu.CompilerParams(
            dimension_semantics=("parallel",),
            vmem_limit_bytes=vmem_limit),
    )(y_p, scale, shift)


def _bn_relu_flat(y_p, scale, shift, *, tm, vmem_limit):
    Mp, Cp = y_p.shape
    return pl.pallas_call(
        _bn_relu_flat_kernel,
        out_shape=jax.ShapeDtypeStruct((Mp, Cp), jnp.float32),
        grid_spec=pltpu.PrefetchScalarGridSpec(
            num_scalar_prefetch=0,
            grid=(Mp // tm,),
            in_specs=[
                pl.BlockSpec((tm, Cp), lambda i: (i, 0)),
                pl.BlockSpec((1, Cp), lambda i: (0, 0)),
                pl.BlockSpec((1, Cp), lambda i: (0, 0)),
            ],
            out_specs=pl.BlockSpec((tm, Cp), lambda i: (i, 0)),
        ),
        compiler_params=pltpu.CompilerParams(
            dimension_semantics=("parallel",),
            vmem_limit_bytes=vmem_limit),
    )(y_p, scale, shift)


# ------------------------------ Module wrapper ------------------------------
@functools.partial(jax.jit, static_argnames=("stride", "padding", "compute_dtype"))
def conv_module_forward(x, conv_w, bn_gamma, bn_beta, *, stride=1, padding=0,
                        compute_dtype=jnp.bfloat16):
    """ConvModule forward: Conv2d(bias=False) -> BatchNorm2d(training batch stats) -> ReLU.

    x:      (N, Cin, H, W)    float32, NCHW
    conv_w: (OC, Cin, KH, KW) float32
    compute_dtype: matmul-input / inter-pass dtype (bf16 default; accumulation is f32).
    """
    N, Cin, H, W = x.shape
    OC, _, KH, KW = conv_w.shape
    s, p = stride, padding
    OH = (H + 2 * p - KH) // s + 1
    OW = (W + 2 * p - KW) // s + 1
    OHW = OH * OW
    M = N * OHW
    K = Cin * KH * KW
    eps = 1e-5
    in_bytes = jnp.dtype(compute_dtype).itemsize
    budget, vmem_limit = _vmem_budget_and_limit()

    # ---- im2col (glue, NHWC / channels-minor, in compute_dtype) ----
    # TODO(synk): implicit GEMM (shifted-window DMA from padded NHWC, no materialized
    # im2col) would remove the KH*KW x input read amplification + the (M,K) HBM write.
    x_nhwc = x.transpose(0, 2, 3, 1).astype(compute_dtype)
    xp = jnp.pad(x_nhwc, ((0, 0), (p, p), (p, p), (0, 0)))
    taps = [xp[:, kh:kh + s * OH:s, kw:kw + s * OW:s, :]
            for kh in range(KH) for kw in range(KW)]            # each (N, OH, OW, Cin)
    x_col = jnp.stack(taps, axis=3).reshape(M, K)               # K order = (kh, kw, cin)
    w_mat = conv_w.transpose(2, 3, 1, 0).reshape(K, OC).astype(compute_dtype)

    # ---- generation-aware tiling + padding ----
    Mp, Kp, Cp, tm, tk, k_tiles, w_resident = _pick_tiles(M, K, OC, in_bytes)
    x_col_p = jnp.pad(x_col, ((0, Mp - M), (0, Kp - K)))
    w_p = jnp.pad(w_mat, ((0, Kp - K), (0, Cp - OC)))

    # Per-channel stats center = conv output at spatial position 0 (cheap 1xKxC matvec);
    # any value near the channel mean avoids E[y^2]-E[y]^2 cancellation.
    center = jnp.dot(x_col_p[0:1, :].astype(jnp.float32), w_p.astype(jnp.float32),
                     preferred_element_type=jnp.float32)         # (1, Cp)

    # ---- Pallas pass 1: conv matmul + fused shifted batch statistics ----
    y_p, psum, psumsq = _conv_bn_stats(
        x_col_p, w_p, center, tm=tm, tk=tk, k_tiles=k_tiles, w_resident=w_resident,
        y_dtype=compute_dtype, vmem_limit=vmem_limit)

    # ---- BN affine coefficients from the fused per-tile stats (tiny glue reduction) ----
    # Zero-padded M rows contribute (-c) / c^2 to the shifted sums; correct for n_pad.
    m_tiles = Mp // tm
    n_pad = Mp - M
    c = center[0]
    sum_sh = psum.reshape(m_tiles, 8, Cp)[:, 0, :].sum(axis=0) + n_pad * c
    ssq_sh = psumsq.reshape(m_tiles, 8, Cp)[:, 0, :].sum(axis=0) - n_pad * c * c
    mean_sh = sum_sh / M
    mean = c + mean_sh
    var = jnp.maximum(ssq_sh / M - mean_sh * mean_sh, 0.0)   # biased batch var (torch BN fwd)
    inv_std = jax.lax.rsqrt(var + eps)
    gamma_p = jnp.pad(bn_gamma.astype(jnp.float32), (0, Cp - OC))
    beta_p = jnp.pad(bn_beta.astype(jnp.float32), (0, Cp - OC))
    scale_vec = gamma_p * inv_std
    shift_vec = beta_p - mean * scale_vec
    scale = scale_vec.reshape(1, Cp)
    shift = shift_vec.reshape(1, Cp)
    # TODO(synk): BatchNorm running_mean / running_var buffer updates are not emitted.

    # ---- Pallas pass 2: fused BN-apply + ReLU (+ in-kernel NCHW writeback when legal) ----
    OHWp = _round_up(OHW, 128)
    g = _pick_group(N, OHW, Cp, in_bytes, budget)
    if g is not None:
        out3 = _bn_relu_nchw(y_p, scale, shift, n_img=N, g=g, ohw=OHW, ohwp=OHWp,
                             vmem_limit=vmem_limit)              # (N, Cp, OHWp)
        out = out3[:, :OC, :OHW].reshape(N, OC, OH, OW)
    else:
        out2 = _bn_relu_flat(y_p, scale, shift, tm=tm, vmem_limit=vmem_limit)  # (Mp, Cp)
        out = out2[:M, :OC].reshape(N, OH, OW, OC).transpose(0, 3, 1, 2)
    return out


# --------------------------------- reference --------------------------------
def _reference(x, conv_w, gamma, beta, stride, padding):
    y = jax.lax.conv_general_dilated(
        x, conv_w, window_strides=(stride, stride),
        padding=[(padding, padding), (padding, padding)],
        dimension_numbers=("NCHW", "OIHW", "NCHW"))
    mean = jnp.mean(y, axis=(0, 2, 3), keepdims=True)
    var = jnp.mean(jnp.square(y - mean), axis=(0, 2, 3), keepdims=True)
    yhat = (y - mean) / jnp.sqrt(var + 1e-5)
    yhat = yhat * gamma[None, :, None, None] + beta[None, :, None, None]
    return jnp.maximum(yhat, 0.0)


if __name__ == "__main__":
    # Small shapes consistent with the module: N=2, Cin=4, H=W=16, OC=8, k=3, s=1, p=1.
    key = jax.random.PRNGKey(0)
    k_x, k_w = jax.random.split(key)
    N, Cin, H, W = 2, 4, 16, 16
    OC, KH, KW = 8, 3, 3
    stride, padding = 1, 1

    x = jax.random.normal(k_x, (N, Cin, H, W), dtype=jnp.float32)
    conv_w = 0.1 * jax.random.normal(k_w, (OC, Cin, KH, KW), dtype=jnp.float32)
    # BatchNorm2d default init: weight=1, bias=0 (conv bias=False).
    bn_gamma = jnp.ones((OC,), jnp.float32)
    bn_beta = jnp.zeros((OC,), jnp.float32)

    ref = _reference(x, conv_w, bn_gamma, bn_beta, stride, padding)

    # f32 compute path: numerically matches the f32 PyTorch module tightly.
    out_f32 = conv_module_forward(x, conv_w, bn_gamma, bn_beta,
                                  stride=stride, padding=padding,
                                  compute_dtype=jnp.float32)
    out_f32 = jax.block_until_ready(out_f32)
    assert out_f32.shape == (N, OC, H, W), out_f32.shape
    assert jnp.allclose(out_f32, ref, atol=1e-4, rtol=1e-4), \
        float(jnp.max(jnp.abs(out_f32 - ref)))

    # Default perf path: bf16 matmul inputs + bf16 inter-pass y, f32 accumulation.
    out_bf16 = conv_module_forward(x, conv_w, bn_gamma, bn_beta,
                                   stride=stride, padding=padding)
    out_bf16 = jax.block_until_ready(out_bf16)
    assert out_bf16.shape == (N, OC, H, W), out_bf16.shape
    assert jnp.allclose(out_bf16, ref, atol=5e-2, rtol=5e-2), \
        float(jnp.max(jnp.abs(out_bf16 - ref)))

    print("KERNEL_OK")
</pallas_src>

<mosaic_0001>
module attributes {stable_mosaic.version = 11 : i64} {
  func.func @_conv_stats_kernel(%arg0: i32, %arg1: i32, %arg2: memref<1x128xf32, #tpu.memory_space<vmem>>, %arg3: memref<256x128xf32, #tpu.memory_space<vmem>>, %arg4: memref<128x128xf32, #tpu.memory_space<vmem>>, %arg5: memref<256x128xf32, #tpu.memory_space<vmem>>, %arg6: memref<8x128xf32, #tpu.memory_space<vmem>>, %arg7: memref<8x128xf32, #tpu.memory_space<vmem>>) attributes {dimension_semantics = [#tpu.dimension_semantics<parallel>, #tpu.dimension_semantics<arbitrary>], iteration_bounds = array<i64: 2, 1>, scalar_prefetch = 0 : i64, scratch_operands = 0 : i64, tpu.core_type = #tpu.core_type<tc>, window_params = [{pipeline_mode = #tpu.pipeline_mode<synchronous>, transform_indices = @transform_0, window_bounds = array<i64: 1, 128>}, {transform_indices = @transform_1, window_bounds = array<i64: 256, 128>}, {pipeline_mode = #tpu.pipeline_mode<synchronous>, transform_indices = @transform_2, window_bounds = array<i64: 128, 128>}, {transform_indices = @transform_3, window_bounds = array<i64: 256, 128>}, {transform_indices = @transform_4, window_bounds = array<i64: 8, 128>}, {transform_indices = @transform_5, window_bounds = array<i64: 8, 128>}]} {
    %c0 = arith.constant 0 : index
    %c0_0 = arith.constant 0 : index
    %0 = vector.load %arg4[%c0, %c0_0] : memref<128x128xf32, #tpu.memory_space<vmem>>, vector<128x128xf32>
    %c0_1 = arith.constant 0 : index
    %c0_2 = arith.constant 0 : index
    %1 = vector.load %arg3[%c0_1, %c0_2] : memref<256x128xf32, #tpu.memory_space<vmem>>, vector<256x128xf32>
    %cst = arith.constant dense<0.000000e+00> : vector<256x128xf32>
    %2 = tpu.matmul %1, %0, %cst {dimension_numbers = #tpu.dot_dimension_numbers<[1], [0], [0], [1], [0, 0, 1, 1], [], []>} : vector<256x128xf32>, vector<128x128xf32>, vector<256x128xf32> -> vector<256x128xf32>
    %c0_3 = arith.constant 0 : index
    %c0_4 = arith.constant 0 : index
    %3 = vector.load %arg5[%c0_3, %c0_4] : memref<256x128xf32, #tpu.memory_space<vmem>>, vector<256x128xf32>
    tpu.vector_store %arg5[%c0_3, %c0_4], %2 {strides = array<i32>} : memref<256x128xf32, #tpu.memory_space<vmem>>, vector<256x128xf32>,
    %c0_5 = arith.constant 0 : index
    %c0_6 = arith.constant 0 : index
    %4 = vector.load %arg2[%c0_5, %c0_6] : memref<1x128xf32, #tpu.memory_space<vmem>>, vector<1x128xf32>
    %5 = vector.broadcast %4 : vector<1x128xf32> to vector<256x128xf32>
    %6 = arith.subf %2, %5 : vector<256x128xf32>
    %cst_7 = arith.constant dense<0.000000e+00> : vector<128xf32>
    %7 = vector.multi_reduction <add>, %6, %cst_7 [0] : vector<256x128xf32> to vector<128xf32>
    %8 = vector.shape_cast %7 : vector<128xf32> to vector<1x128xf32>
    %c0_8 = arith.constant 0 : index
    %c0_9 = arith.constant 0 : index
    %9 = vector.load %arg6[%c0_8, %c0_9] : memref<8x128xf32, #tpu.memory_space<vmem>>, vector<1x128xf32>
    tpu.vector_store %arg6[%c0_8, %c0_9], %8 {strides = array<i32>} : memref<8x128xf32, #tpu.memory_space<vmem>>, vector<1x128xf32>,
    %10 = arith.mulf %6, %6 : vector<256x128xf32>
    %cst_10 = arith.constant dense<0.000000e+00> : vector<128xf32>
    %11 = vector.multi_reduction <add>, %10, %cst_10 [0] : vector<256x128xf32> to vector<128xf32>
    %12 = vector.shape_cast %11 : vector<128xf32> to vector<1x128xf32>
    %c0_11 = arith.constant 0 : index
    %c0_12 = arith.constant 0 : index
    %13 = vector.load %arg7[%c0_11, %c0_12] : memref<8x128xf32, #tpu.memory_space<vmem>>, vector<1x128xf32>
    tpu.vector_store %arg7[%c0_11, %c0_12], %12 {strides = array<i32>} : memref<8x128xf32, #tpu.memory_space<vmem>>, vector<1x128xf32>,
    return
  }
  func.func @transform_0(%arg0: i32, %arg1: i32) -> (i32, i32) {
    %c0_i32 = arith.constant 0 : i32
    %c0_i32_0 = arith.constant 0 : i32
    %c0_i32_1 = arith.constant 0 : i32
    return %c0_i32, %c0_i32_0 : i32, i32
  }
  func.func @transform_1(%arg0: i32, %arg1: i32) -> (i32, i32) {
    %c0_i32 = arith.constant 0 : i32
    return %arg0, %arg1 : i32, i32
  }
  func.func @transform_2(%arg0: i32, %arg1: i32) -> (i32, i32) {
    %c0_i32 = arith.constant 0 : i32
    %c0_i32_0 = arith.constant 0 : i32
    %c0_i32_1 = arith.constant 0 : i32
    return %c0_i32, %c0_i32_0 : i32, i32
  }
  func.func @transform_3(%arg0: i32, %arg1: i32) -> (i32, i32) {
    %c0_i32 = arith.constant 0 : i32
    %c0_i32_0 = arith.constant 0 : i32
    return %arg0, %c0_i32 : i32, i32
  }
  func.func @transform_4(%arg0: i32, %arg1: i32) -> (i32, i32) {
    %c0_i32 = arith.constant 0 : i32
    %c0_i32_0 = arith.constant 0 : i32
    return %arg0, %c0_i32 : i32, i32
  }
  func.func @transform_5(%arg0: i32, %arg1: i32) -> (i32, i32) {
    %c0_i32 = arith.constant 0 : i32
    %c0_i32_0 = arith.constant 0 : i32
    return %arg0, %c0_i32 : i32, i32
  }
}

module attributes {stable_mosaic.version = 11 : i64} {
  func.func @_bn_relu_nchw_kernel(%arg0: i32, %arg1: memref<256x128xf32, #tpu.memory_space<vmem>>, %arg2: memref<1x128xf32, #tpu.memory_space<vmem>>, %arg3: memref<1x128xf32, #tpu.memory_space<vmem>>, %arg4: memref<1x128x256xf32, #tpu.memory_space<vmem>>) attributes {dimension_semantics = [#tpu.dimension_semantics<parallel>], iteration_bounds = array<i64: 2>, scalar_prefetch = 0 : i64, scratch_operands = 0 : i64, tpu.core_type = #tpu.core_type<tc>, window_params = [{transform_indices = @transform_0, window_bounds = array<i64: 256, 128>}, {pipeline_mode = #tpu.pipeline_mode<synchronous>, transform_indices = @transform_1, window_bounds = array<i64: 1, 128>}, {pipeline_mode = #tpu.pipeline_mode<synchronous>, transform_indices = @transform_2, window_bounds = array<i64: 1, 128>}, {transform_indices = @transform_3, window_bounds = array<i64: 1, 128, 256>}]} {
    %c0 = arith.constant 0 : index
    %c0_0 = arith.constant 0 : index
    %0 = vector.load %arg1[%c0, %c0_0] : memref<256x128xf32, #tpu.memory_space<vmem>>, vector<256x128xf32>
    %c0_1 = arith.constant 0 : index
    %c0_2 = arith.constant 0 : index
    %1 = vector.load %arg2[%c0_1, %c0_2] : memref<1x128xf32, #tpu.memory_space<vmem>>, vector<1x128xf32>
    %2 = vector.broadcast %1 : vector<1x128xf32> to vector<256x128xf32>
    %3 = arith.mulf %0, %2 : vector<256x128xf32>
    %c0_3 = arith.constant 0 : index
    %c0_4 = arith.constant 0 : index
    %4 = vector.load %arg3[%c0_3, %c0_4] : memref<1x128xf32, #tpu.memory_space<vmem>>, vector<1x128xf32>
    %5 = vector.broadcast %4 : vector<1x128xf32> to vector<256x128xf32>
    %6 = arith.addf %3, %5 : vector<256x128xf32>
    %cst = arith.constant 0.000000e+00 : f32
    %7 = vector.broadcast %cst : f32 to vector<256x128xf32>
    %8 = arith.maximumf %6, %7 : vector<256x128xf32>
    %9 = vector.shape_cast %8 : vector<256x128xf32> to vector<1x256x128xf32>
    %10 = tpu.transpose %9, [0, 2, 1] : vector<1x256x128xf32> -> vector<1x128x256xf32>
    %c0_5 = arith.constant 0 : index
    %c0_6 = arith.constant 0 : index
    %c0_7 = arith.constant 0 : index
    %11 = vector.load %arg4[%c0_5, %c0_6, %c0_7] : memref<1x128x256xf32, #tpu.memory_space<vmem>>, vector<1x128x256xf32>
    tpu.vector_store %arg4[%c0_5, %c0_6, %c0_7], %10 {strides = array<i32>} : memref<1x128x256xf32, #tpu.memory_space<vmem>>, vector<1x128x256xf32>,
    return
  }
  func.func @transform_0(%arg0: i32) -> (i32, i32) {
    %c0_i32 = arith.constant 0 : i32
    %c0_i32_0 = arith.constant 0 : i32
    return %arg0, %c0_i32 : i32, i32
  }
  func.func @transform_1(%arg0: i32) -> (i32, i32) {
    %c0_i32 = arith.constant 0 : i32
    %c0_i32_0 = arith.constant 0 : i32
    %c0_i32_1 = arith.constant 0 : i32
    return %c0_i32, %c0_i32_0 : i32, i32
  }
  func.func @transform_2(%arg0: i32) -> (i32, i32) {
    %c0_i32 = arith.constant 0 : i32
    %c0_i32_0 = arith.constant 0 : i32
    %c0_i32_1 = arith.constant 0 : i32
    return %c0_i32, %c0_i32_0 : i32, i32
  }
  func.func @transform_3(%arg0: i32) -> (i32, i32, i32) {
    %c0_i32 = arith.constant 0 : i32
    %c0_i32_0 = arith.constant 0 : i32
    %c0_i32_1 = arith.constant 0 : i32
    return %arg0, %c0_i32, %c0_i32_0 : i32, i32, i32
  }
}

</mosaic_0001>

<llo_original>
// kernel: conv_module_forward.3
$region0: #{conv_module_forward.3}
  #allocation0 [shape = 'u32[]', space=smem, size = 0x4, offset = 0x4, fixed_abs, tag = 'smem constant byte address 0x4 - core index']
  #allocation1 [shape = 'u32[144,128]{1,0:T(1,128)}', space=vmem, size = 0x12000, scoped, tag = 'internal scratch']
  %s0 = inlined_call_operand.vmem [shape: f32[512,128], index: 0, kind: input, shape index: {}]
  %s1 = inlined_call_operand.vmem [shape: f32[1,128], index: 1, kind: input, shape index: {}]
  %s2 = inlined_call_operand.vmem [shape: f32[1,128], index: 2, kind: input, shape index: {}]
  %s3 = inlined_call_operand.vmem [shape: f32[2,128,256], index: 3, kind: output, shape index: {}]
  %s4 = sld [smem:[#allocation0]]
  $region45: #{conv_module_forward.3} parent=0
    _
  %s6 = ssub.s32 1, %s4
  %s7 = scalar_select 0, %s6, %s4
  loop: start=0, step=1, limit=4
  $region2: #{conv_module_forward.3} parent=0 // loop_pre_header
    _
  $region3: #{conv_module_forward.3} parent=0 // loop_header
    %s9 = sphi 0, %s13
    %p10 = scmp.ge.s32.totalorder %s9, 4
    %s19 = sphi 0, %s21
    %s22 = sphi 0, %s19
    %s23 = sphi 0, %s22
    %s39 = sphi 0, %s23
    %s43 = sphi 0, %s43
    %s45 = sphi 0, %s43
    %s46 = sphi 0, %s45
    %s60 = sphi 0, %s46
    %s64 = sphi 0, %s64
    %s66 = sphi 0, %s64
    %s67 = sphi 0, %s66
    %s81 = sphi 0, %s67
    %s87 = sphi 0, %s89
    %s90 = sphi 0, %s87
    %s91 = sphi 0, %s90
    %s107 = sphi 0, %s91
  $region4: #{conv_module_forward.3} parent=0 // loop_header_branch
    %12 = sbr.rel (%p10) target = $region8
  $region5: #{conv_module_forward.3} parent=0 // loop_body
    %s14 = ssub.s32 %s9, 1
    %s15 = ssub.s32 %s9, 2
    %s16 = sadd.s32 %s9, 1
    %s17 = ssub.s32 %s9, %s16
    %p18 = scmp.eq.s32.totalorder %s17, 0
    %s20 = sadd.s32 %s19, 1
    %s21 = scalar_select %p18, %s19, %s20
    %p24 = pneg %p18
    %p25 = scmp.eq.s32.totalorder %s9, 1
    %p26 = por %p24, %p25
    %p27 = scmp.ne.s32.totalorder %s19, %s22
    %p28 = scmp.eq.s32.totalorder %s9, 0
    %p29 = por %p27, %p28
    %p30 = scmp.ne.s32.totalorder %s19, %s22
    %p31 = scmp.eq.s32.totalorder %s14, 1
    %p32 = por %p30, %p31
    %p33 = scmp.ne.s32.totalorder %s22, %s23
    %p34 = scmp.eq.s32.totalorder %s14, 0
    %p35 = por %p33, %p34
    %p36 = scmp.ne.s32.totalorder %s22, %s23
    %p37 = scmp.eq.s32.totalorder %s15, 1
    %p38 = por %p36, %p37
    %p40 = scmp.ne.s32.totalorder %s23, %s39
    %p41 = scmp.eq.s32.totalorder %s15, 0
    %p42 = por %p40, %p41
    %s44 = sadd.s32 %s43, 1
    %p47 = scmp.eq.s32.totalorder %s9, 1
    %p48 = scmp.ne.s32.totalorder %s43, %s45
    %p49 = scmp.eq.s32.totalorder %s9, 0
    %p50 = por %p48, %p49
    %p51 = scmp.ne.s32.totalorder %s43, %s45
    %p52 = scmp.eq.s32.totalorder %s14, 1
    %p53 = por %p51, %p52
    %p54 = scmp.ne.s32.totalorder %s45, %s46
    %p55 = scmp.eq.s32.totalorder %s14, 0
    %p56 = por %p54, %p55
    %p57 = scmp.ne.s32.totalorder %s45, %s46
    %p58 = scmp.eq.s32.totalorder %s15, 1
    %p59 = por %p57, %p58
    %p61 = scmp.ne.s32.totalorder %s46, %s60
    %p62 = scmp.eq.s32.totalorder %s15, 0
    %p63 = por %p61, %p62
    %s65 = sadd.s32 %s64, 1
    %p68 = scmp.eq.s32.totalorder %s9, 1
    %p69 = scmp.ne.s32.totalorder %s64, %s66
    %p70 = scmp.eq.s32.totalorder %s9, 0
    %p71 = por %p69, %p70
    %p72 = scmp.ne.s32.totalorder %s64, %s66
    %p73 = scmp.eq.s32.totalorder %s14, 1
    %p74 = por %p72, %p73
    %p75 = scmp.ne.s32.totalorder %s66, %s67
    %p76 = scmp.eq.s32.totalorder %s14, 0
    %p77 = por %p75, %p76
    %p78 = scmp.ne.s32.totalorder %s66, %s67
    %p79 = scmp.eq.s32.totalorder %s15, 1
    %p80 = por %p78, %p79
    %p82 = scmp.ne.s32.totalorder %s67, %s81
    %p83 = scmp.eq.s32.totalorder %s15, 0
    %p84 = por %p82, %p83
    %s85 = ssub.s32 %s9, %s16
    %p86 = scmp.eq.s32.totalorder %s85, 0
    %s88 = sadd.s32 %s87, 1
    %s89 = scalar_select %p86, %s87, %s88
    %p92 = pneg %p86
    %p93 = scmp.eq.s32.totalorder %s9, 1
    %p94 = por %p92, %p93
    %p95 = scmp.ne.s32.totalorder %s87, %s90
    %p96 = scmp.eq.s32.totalorder %s9, 0
    %p97 = por %p95, %p96
    %p98 = scmp.ne.s32.totalorder %s87, %s90
    %p99 = scmp.eq.s32.totalorder %s14, 1
    %p100 = por %p98, %p99
    %p101 = scmp.ne.s32.totalorder %s90, %s91
    %p102 = scmp.eq.s32.totalorder %s14, 0
    %p103 = por %p101, %p102
    %p104 = scmp.ne.s32.totalorder %s90, %s91
    %p105 = scmp.eq.s32.totalorder %s15, 1
    %p106 = por %p104, %p105
    %p108 = scmp.ne.s32.totalorder %s91, %s107
    %p109 = scmp.eq.s32.totalorder %s15, 0
    %p110 = por %p108, %p109
    %p111 = scmp.le.s32.totalorder 1, %s9
    %p112 = scmp.lt.s32.totalorder %s9, 3
    %p113 = pnand %p111, %p112
    %p114 = pneg %p113
    // Predicated region
    $region9: #{conv_module_forward.3} parent=5 // pred_check
      _
    $region10: #{conv_module_forward.3} parent=5 // pred_check_branch
      %116 = sbr.rel (%p113) target = $region12
    $region11: #{conv_module_forward.3} parent=5 // pred_region
      %s117 = ssub.s32 %s9, 1
      // Predicated region
      $region13: #{conv_module_forward.3} parent=11 // pred_check
        %p118 = pneg %p56
      $region14: #{conv_module_forward.3} parent=11 // pred_check_branch
        %120 = sbr.rel (%p118) target = $region16
      $region15: #{conv_module_forward.3} parent=11 // pred_region
        _
      $region16: #{conv_module_forward.3} parent=11 // pred_fallthru
        _
      // Predicated region
      $region17: #{conv_module_forward.3} parent=11 // pred_check
        %p121 = pneg %p77
      $region18: #{conv_module_forward.3} parent=11 // pred_check_branch
        %123 = sbr.rel (%p121) target = $region20
      $region19: #{conv_module_forward.3} parent=11 // pred_region
        _
      $region20: #{conv_module_forward.3} parent=11 // pred_fallthru
        _
    $region12: #{conv_module_forward.3} parent=5 // pred_fallthru
      _
    %p124 = scmp.lt.s32.totalorder %s9, 2
    // Predicated region
    $region21: #{conv_module_forward.3} parent=5 // pred_check
      %p125 = pneg %p124
    $region22: #{conv_module_forward.3} parent=5 // pred_check_branch
      %127 = sbr.rel (%p125) target = $region24
    $region23: #{conv_module_forward.3} parent=5 // pred_region
      // Predicated region
      $region25: #{conv_module_forward.3} parent=23 // pred_check
        %p128 = pneg %p29
      $region26: #{conv_module_forward.3} parent=23 // pred_check_branch
        %130 = sbr.rel (%p128) target = $region28
      $region27: #{conv_module_forward.3} parent=23 // pred_region
        %s131 = smul.u32 32, %s9
        %p132 = scmp.lt.s32.totalorder %s131, 63
        %s133 = scalar_select %p132, %s131, 63
        %s134 = smul.addr %s133, 8
        %s135 = scalar_lea.vmem %s0, %s134
        %s136 = smul.u32 32, %s9
      $region28: #{conv_module_forward.3} parent=23 // pred_fallthru
        _
    $region24: #{conv_module_forward.3} parent=5 // pred_fallthru
      _
    %p137 = scmp.le.s32.totalorder 1, %s9
    %p138 = scmp.lt.s32.totalorder %s9, 3
    %p139 = pnand %p137, %p138
    %p140 = pneg %p139
    // Predicated region
    $region29: #{conv_module_forward.3} parent=5 // pred_check
      _
    $region30: #{conv_module_forward.3} parent=5 // pred_check_branch
      %142 = sbr.rel (%p139) target = $region32
    $region31: #{conv_module_forward.3} parent=5 // pred_region
      %s143 = ssub.s32 %s9, 1
      %s144 = smul.u32 32, %s14
      %p145 = scmp.lt.s32.totalorder %s144, 63
      %s146 = scalar_select %p145, %s144, 63
      %s147 = smul.addr %s146, 8
      %s148 = scalar_lea.vmem %s0, %s147
      %p149 = pneg %p35
      %p150 = pneg %p32
      %p151 = pneg %p56
      %p152 = pneg %p53
      %p153 = pneg %p77
      %p154 = pneg %p74
      %p155 = pneg %p103
      %p156 = pneg %p100
      %p157 = scmp.lt.s32.totalorder %s14, 1
      %s158 = scalar_select %p157, %s14, 1
      %s159 = smul.addr %s158, 32
      %s160 = smul.addr %s159, 8
      %s161 = scalar_lea.vmem %s3, %s160
      %s162 = smul.u32 32, %s14
      %p163 = scmp.lt.s32.totalorder %s162, 63
      %s164 = scalar_select %p163, %s162, 63
      %s165 = smul.addr %s164, 8
      %s166 = scalar_lea.vmem %s0, %s165
      %s167 = smul.u32 32, %s14
      %p168 = scmp.lt.s32.totalorder %s14, 1
      %s169 = scalar_select %p168, %s14, 1
      %s170 = smul.addr %s169, 32
      %s171 = smul.addr %s170, 8
      %s172 = scalar_lea.vmem %s3, %s171
      %v173 = vld [vmem:[%s166] sm:$0xff]
      %v174 = vld [vmem:[%s166 + $0x8] sm:$0xff]
      %v175 = vld [vmem:[%s166 + $0x10] sm:$0xff]
      %v176 = vld [vmem:[%s166 + $0x18] sm:$0xff]
      %v177 = vld [vmem:[%s166 + $0x20] sm:$0xff]
      %v178 = vld [vmem:[%s166 + $0x28] sm:$0xff]
      %v179 = vld [vmem:[%s166 + $0x30] sm:$0xff]
      %v180 = vld [vmem:[%s166 + $0x38] sm:$0xff]
      %v181 = vld [vmem:[%s166 + $0x40] sm:$0xff]
      %v182 = vld [vmem:[%s166 + $0x48] sm:$0xff]
      %v183 = vld [vmem:[%s166 + $0x50] sm:$0xff]
      %v184 = vld [vmem:[%s166 + $0x58] sm:$0xff]
      %v185 = vld [vmem:[%s166 + $0x60] sm:$0xff]
      %v186 = vld [vmem:[%s166 + $0x68] sm:$0xff]
      %v187 = vld [vmem:[%s166 + $0x70] sm:$0xff]
      %v188 = vld [vmem:[%s166 + $0x78] sm:$0xff]
      %v189 = vld [vmem:[%s166 + $0x80] sm:$0xff]
      %v190 = vld [vmem:[%s166 + $0x88] sm:$0xff]
      %v191 = vld [vmem:[%s166 + $0x90] sm:$0xff]
      %v192 = vld [vmem:[%s166 + $0x98] sm:$0xff]
      %v193 = vld [vmem:[%s166 + $0xa0] sm:$0xff]
      %v194 = vld [vmem:[%s166 + $0xa8] sm:$0xff]
      %v195 = vld [vmem:[%s166 + $0xb0] sm:$0xff]
      %v196 = vld [vmem:[%s166 + $0xb8] sm:$0xff]
      %v197 = vld [vmem:[%s166 + $0xc0] sm:$0xff]
      %v198 = vld [vmem:[%s166 + $0xc8] sm:$0xff]
      %v199 = vld [vmem:[%s166 + $0xd0] sm:$0xff]
      %v200 = vld [vmem:[%s166 + $0xd8] sm:$0xff]
      %v201 = vld [vmem:[%s166 + $0xe0] sm:$0xff]
      %v202 = vld [vmem:[%s166 + $0xe8] sm:$0xff]
      %v203 = vld [vmem:[%s166 + $0xf0] sm:$0xff]
      %v204 = vld [vmem:[%s166 + $0xf8] sm:$0xff]
      %v205 = vld [vmem:[%s1] sm:$0x1]
      %v207 = vlaneseq
      %v208 = vshrl.u32 %v207, 7
      %v209 = vsub.s32 0, %v208
      %v210 = vrot.slane %v205, %v209
      %v212 = vmul.f32 %v173, %v210
      %v213 = vmul.f32 %v174, %v210
      %v214 = vmul.f32 %v175, %v210
      %v215 = vmul.f32 %v176, %v210
      %v216 = vmul.f32 %v177, %v210
      %v217 = vmul.f32 %v178, %v210
      %v218 = vmul.f32 %v179, %v210
      %v219 = vmul.f32 %v180, %v210
      %v220 = vmul.f32 %v181, %v210
      %v221 = vmul.f32 %v182, %v210
      %v222 = vmul.f32 %v183, %v210
      %v223 = vmul.f32 %v184, %v210
      %v224 = vmul.f32 %v185, %v210
      %v225 = vmul.f32 %v186, %v210
      %v226 = vmul.f32 %v187, %v210
      %v227 = vmul.f32 %v188, %v210
      %v228 = vmul.f32 %v189, %v210
      %v229 = vmul.f32 %v190, %v210
      %v230 = vmul.f32 %v191, %v210
      %v231 = vmul.f32 %v192, %v210
      %v232 = vmul.f32 %v193, %v210
      %v233 = vmul.f32 %v194, %v210
      %v234 = vmul.f32 %v195, %v210
      %v235 = vmul.f32 %v196, %v210
      %v236 = vmul.f32 %v197, %v210
      %v237 = vmul.f32 %v198, %v210
      %v238 = vmul.f32 %v199, %v210
      %v239 = vmul.f32 %v200, %v210
      %v240 = vmul.f32 %v201, %v210
      %v241 = vmul.f32 %v202, %v210
      %v242 = vmul.f32 %v203, %v210
      %v243 = vmul.f32 %v204, %v210
      %v244 = vld [vmem:[%s2] sm:$0x1]
      %v246 = vlaneseq
      %v247 = vshrl.u32 %v246, 7
      %v248 = vsub.s32 0, %v247
      %v249 = vrot.slane %v244, %v248
      %v251 = vadd.f32 %v212, %v249
      %v252 = vadd.f32 %v213, %v249
      %v253 = vadd.f32 %v214, %v249
      %v254 = vadd.f32 %v215, %v249
      %v255 = vadd.f32 %v216, %v249
      %v256 = vadd.f32 %v217, %v249
      %v257 = vadd.f32 %v218, %v249
      %v258 = vadd.f32 %v219, %v249
      %v259 = vadd.f32 %v220, %v249
      %v260 = vadd.f32 %v221, %v249
      %v261 = vadd.f32 %v222, %v249
      %v262 = vadd.f32 %v223, %v249
      %v263 = vadd.f32 %v224, %v249
      %v264 = vadd.f32 %v225, %v249
      %v265 = vadd.f32 %v226, %v249
      %v266 = vadd.f32 %v227, %v249
      %v267 = vadd.f32 %v228, %v249
      %v268 = vadd.f32 %v229, %v249
      %v269 = vadd.f32 %v230, %v249
      %v270 = vadd.f32 %v231, %v249
      %v271 = vadd.f32 %v232, %v249
      %v272 = vadd.f32 %v233, %v249
      %v273 = vadd.f32 %v234, %v249
      %v274 = vadd.f32 %v235, %v249
      %v275 = vadd.f32 %v236, %v249
      %v276 = vadd.f32 %v237, %v249
      %v277 = vadd.f32 %v238, %v249
      %v278 = vadd.f32 %v239, %v249
      %v279 = vadd.f32 %v240, %v249
      %v280 = vadd.f32 %v241, %v249
      %v281 = vadd.f32 %v242, %v249
      %v282 = vadd.f32 %v243, %v249
      %v283 = vmax.f32 %v251, 0.0
      %v284 = vmax.f32 %v252, 0.0
      %v285 = vmax.f32 %v253, 0.0
      %v286 = vmax.f32 %v254, 0.0
      %v287 = vmax.f32 %v255, 0.0
      %v288 = vmax.f32 %v256, 0.0
      %v289 = vmax.f32 %v257, 0.0
      %v290 = vmax.f32 %v258, 0.0
      %v291 = vmax.f32 %v259, 0.0
      %v292 = vmax.f32 %v260, 0.0
      %v293 = vmax.f32 %v261, 0.0
      %v294 = vmax.f32 %v262, 0.0
      %v295 = vmax.f32 %v263, 0.0
      %v296 = vmax.f32 %v264, 0.0
      %v297 = vmax.f32 %v265, 0.0
      %v298 = vmax.f32 %v266, 0.0
      %v299 = vmax.f32 %v267, 0.0
      %v300 = vmax.f32 %v268, 0.0
      %v301 = vmax.f32 %v269, 0.0
      %v302 = vmax.f32 %v270, 0.0
      %v303 = vmax.f32 %v271, 0.0
      %v304 = vmax.f32 %v272, 0.0
      %v305 = vmax.f32 %v273, 0.0
      %v306 = vmax.f32 %v274, 0.0
      %v307 = vmax.f32 %v275, 0.0
      %v308 = vmax.f32 %v276, 0.0
      %v309 = vmax.f32 %v277, 0.0
      %v310 = vmax.f32 %v278, 0.0
      %v311 = vmax.f32 %v279, 0.0
      %v312 = vmax.f32 %v280, 0.0
      %v313 = vmax.f32 %v281, 0.0
      %v314 = vmax.f32 %v282, 0.0
      %315 = vxpose.xlu0.b32.start [1/16] %v283, 128
      %316 = vxpose.xlu0.b32.cont [2/16] %v284, 128
      %317 = vxpose.xlu0.b32.cont [3/16] %v285, 128
      %318 = vxpose.xlu0.b32.cont [4/16] %v286, 128
      %319 = vxpose.xlu0.b32.cont [5/16] %v287, 128
      %320 = vxpose.xlu0.b32.cont [6/16] %v288, 128
      %321 = vxpose.xlu0.b32.cont [7/16] %v289, 128
      %322 = vxpose.xlu0.b32.cont [8/16] %v290, 128
      %323 = vxpose.xlu0.b32.cont [9/16] %v291, 128
      %324 = vxpose.xlu0.b32.cont [10/16] %v292, 128
      %325 = vxpose.xlu0.b32.cont [11/16] %v293, 128
      %326 = vxpose.xlu0.b32.cont [12/16] %v294, 128
      %327 = vxpose.xlu0.b32.cont [13/16] %v295, 128
      %328 = vxpose.xlu0.b32.cont [14/16] %v296, 128
      %329 = vxpose.xlu0.b32.cont [15/16] %v297, 128
      %330 = vxpose.xlu0.b32.end [16/16] %v298, 128
      %v331 = vpop.trf.xlu0
      %v332 = vpop.trf.xlu0
      %v333 = vpop.trf.xlu0
      %v334 = vpop.trf.xlu0
      %v335 = vpop.trf.xlu0
      %v336 = vpop.trf.xlu0
      %v337 = vpop.trf.xlu0
      %v338 = vpop.trf.xlu0
      %v339 = vpop.trf.xlu0
      %v340 = vpop.trf.xlu0
      %v341 = vpop.trf.xlu0
      %v342 = vpop.trf.xlu0
      %v343 = vpop.trf.xlu0
      %v344 = vpop.trf.xlu0
      %v345 = vpop.trf.xlu0
      %v346 = vpop.trf.xlu0
      %347 = vxpose.xlu0.b32.start [1/16] %v299, 128
      %348 = vxpose.xlu0.b32.cont [2/16] %v300, 128
      %349 = vxpose.xlu0.b32.cont [3/16] %v301, 128
      %350 = vxpose.xlu0.b32.cont [4/16] %v302, 128
      %351 = vxpose.xlu0.b32.cont [5/16] %v303, 128
      %352 = vxpose.xlu0.b32.cont [6/16] %v304, 128
      %353 = vxpose.xlu0.b32.cont [7/16] %v305, 128
      %354 = vxpose.xlu0.b32.cont [8/16] %v306, 128
      %355 = vxpose.xlu0.b32.cont [9/16] %v307, 128
      %356 = vxpose.xlu0.b32.cont [10/16] %v308, 128
      %357 = vxpose.xlu0.b32.cont [11/16] %v309, 128
      %358 = vxpose.xlu0.b32.cont [12/16] %v310, 128
      %359 = vxpose.xlu0.b32.cont [13/16] %v311, 128
      %360 = vxpose.xlu0.b32.cont [14/16] %v312, 128
      %361 = vxpose.xlu0.b32.cont [15/16] %v313, 128
      %362 = vxpose.xlu0.b32.end [16/16] %v314, 128
      %v363 = vpop.trf.xlu0
      %v364 = vpop.trf.xlu0
      %v365 = vpop.trf.xlu0
      %v366 = vpop.trf.xlu0
      %v367 = vpop.trf.xlu0
      %v368 = vpop.trf.xlu0
      %v369 = vpop.trf.xlu0
      %v370 = vpop.trf.xlu0
      %v371 = vpop.trf.xlu0
      %v372 = vpop.trf.xlu0
      %v373 = vpop.trf.xlu0
      %v374 = vpop.trf.xlu0
      %v375 = vpop.trf.xlu0
      %v376 = vpop.trf.xlu0
      %v377 = vpop.trf.xlu0
      %v378 = vpop.trf.xlu0
      %379 = vst [vmem:[%s172] sm:$0xff] %v331
      %380 = vst [vmem:[%s172 + $0x8] sm:$0xff] %v363
      %381 = vst [vmem:[%s172 + $0x10] sm:$0xff] %v332
      %382 = vst [vmem:[%s172 + $0x18] sm:$0xff] %v364
      %383 = vst [vmem:[%s172 + $0x20] sm:$0xff] %v333
      %384 = vst [vmem:[%s172 + $0x28] sm:$0xff] %v365
      %385 = vst [vmem:[%s172 + $0x30] sm:$0xff] %v334
      %386 = vst [vmem:[%s172 + $0x38] sm:$0xff] %v366
      %387 = vst [vmem:[%s172 + $0x40] sm:$0xff] %v335
      %388 = vst [vmem:[%s172 + $0x48] sm:$0xff] %v367
      %389 = vst [vmem:[%s172 + $0x50] sm:$0xff] %v336
      %390 = vst [vmem:[%s172 + $0x58] sm:$0xff] %v368
      %391 = vst [vmem:[%s172 + $0x60] sm:$0xff] %v337
      %392 = vst [vmem:[%s172 + $0x68] sm:$0xff] %v369
      %393 = vst [vmem:[%s172 + $0x70] sm:$0xff] %v338
      %394 = vst [vmem:[%s172 + $0x78] sm:$0xff] %v370
      %395 = vst [vmem:[%s172 + $0x80] sm:$0xff] %v339
      %396 = vst [vmem:[%s172 + $0x88] sm:$0xff] %v371
      %397 = vst [vmem:[%s172 + $0x90] sm:$0xff] %v340
      %398 = vst [vmem:[%s172 + $0x98] sm:$0xff] %v372
      %399 = vst [vmem:[%s172 + $0xa0] sm:$0xff] %v341
      %400 = vst [vmem:[%s172 + $0xa8] sm:$0xff] %v373
      %401 = vst [vmem:[%s172 + $0xb0] sm:$0xff] %v342
      %402 = vst [vmem:[%s172 + $0xb8] sm:$0xff] %v374
      %403 = vst [vmem:[%s172 + $0xc0] sm:$0xff] %v343
      %404 = vst [vmem:[%s172 + $0xc8] sm:$0xff] %v375
      %405 = vst [vmem:[%s172 + $0xd0] sm:$0xff] %v344
      %406 = vst [vmem:[%s172 + $0xd8] sm:$0xff] %v376
      %407 = vst [vmem:[%s172 + $0xe0] sm:$0xff] %v345
      %408 = vst [vmem:[%s172 + $0xe8] sm:$0xff] %v377
      %409 = vst [vmem:[%s172 + $0xf0] sm:$0xff] %v346
      %410 = vst [vmem:[%s172 + $0xf8] sm:$0xff] %v378
      %p411 = scmp.lt.s32.totalorder %s14, 1
      %s412 = scalar_select %p411, %s14, 1
      %s413 = smul.addr %s412, 32
      %s414 = smul.addr %s413, 8
      %s415 = scalar_lea.vmem %s3, %s414
      // Predicated region
      $region33: #{conv_module_forward.3} parent=31 // pred_check
        %p416 = pneg %p100
      $region34: #{conv_module_forward.3} parent=31 // pred_check_branch
        %418 = sbr.rel (%p416) target = $region36
      $region35: #{conv_module_forward.3} parent=31 // pred_region
        _
      $region36: #{conv_module_forward.3} parent=31 // pred_fallthru
        _
    $region32: #{conv_module_forward.3} parent=5 // pred_fallthru
      _
    %p419 = scmp.le.s32.totalorder 2, %s9
    // Predicated region
    $region37: #{conv_module_forward.3} parent=5 // pred_check
      %p420 = pneg %p419
    $region38: #{conv_module_forward.3} parent=5 // pred_check_branch
      %422 = sbr.rel (%p420) target = $region40
    $region39: #{conv_module_forward.3} parent=5 // pred_region
      %s423 = ssub.s32 %s9, 2
      // Predicated region
      $region41: #{conv_module_forward.3} parent=39 // pred_check
        %p424 = pneg %p106
      $region42: #{conv_module_forward.3} parent=39 // pred_check_branch
        %426 = sbr.rel (%p424) target = $region44
      $region43: #{conv_module_forward.3} parent=39 // pred_region
        %p427 = scmp.lt.s32.totalorder %s15, 1
        %s428 = scalar_select %p427, %s15, 1
        %s429 = smul.addr %s428, 32
        %s430 = smul.addr %s429, 8
        %s431 = scalar_lea.vmem %s3, %s430
      $region44: #{conv_module_forward.3} parent=39 // pred_fallthru
        _
    $region40: #{conv_module_forward.3} parent=5 // pred_fallthru
      _
  $region6: #{conv_module_forward.3} parent=0 // loop_footer
    %s13 = sadd.s32 1, %s9
  $region7: #{conv_module_forward.3} parent=0 // loop_footer_branch
    %8 = sbr.rel target = $region3
  $region8: #{conv_module_forward.3} parent=0 // loop_exit
    _

// kernel: conv_module_forward.2
$region0: #{conv_module_forward.2}
  #allocation0 [shape = 'u32[]', space=smem, size = 0x4, offset = 0x4, fixed_abs, tag = 'smem constant byte address 0x4 - core index']
  #allocation1 [shape = 'u32[144,128]{1,0:T(1,128)}', space=vmem, size = 0x12000, scoped, tag = 'internal scratch']
  %s0 = inlined_call_operand.vmem [shape: f32[1,128], index: 0, kind: input, shape index: {}]
  %s1 = inlined_call_operand.vmem [shape: f32[512,128], index: 1, kind: input, shape index: {}]
  %s2 = inlined_call_operand.vmem [shape: f32[128,128], index: 2, kind: input, shape index: {}]
  %s3 = inlined_call_operand.vmem [shape: f32[512,128], index: 3, kind: output, shape index: {0}]
  %s4 = inlined_call_operand.vmem [shape: f32[16,128], index: 4, kind: output, shape index: {1}]
  %s5 = inlined_call_operand.vmem [shape: f32[16,128], index: 5, kind: output, shape index: {2}]
  %6 = xla_tuple %s3, %s4, %s5
  %s7 = sld [smem:[#allocation0]]
  $region61: #{conv_module_forward.2} parent=0
    _
  %s9 = ssub.s32 1, %s7
  %s10 = scalar_select 0, %s9, %s7
  loop: start=0, step=1, limit=4
  $region2: #{conv_module_forward.2} parent=0 // loop_pre_header
    _
  $region3: #{conv_module_forward.2} parent=0 // loop_header
    %s12 = sphi 0, %s16
    %p13 = scmp.ge.s32.totalorder %s12, 4
    %s19 = sphi 0, %s31
    %s20 = sphi 0, %s27
    %s21 = sphi 0, %s19
    %s22 = sphi 0, %s20
    %s23 = sphi 0, %s21
    %s24 = sphi 0, %s22
    %s32 = sphi 0, %s32
    %s34 = sphi 0, %s32
    %s35 = sphi 0, %s34
    %s49 = sphi 0, %s35
    %s57 = sphi 0, %s59
    %s60 = sphi 0, %s57
    %s61 = sphi 0, %s60
    %s77 = sphi 0, %s61
    %s81 = sphi 0, %s81
    %s83 = sphi 0, %s81
    %s84 = sphi 0, %s83
    %s98 = sphi 0, %s84
    %s104 = sphi 0, %s106
    %s107 = sphi 0, %s104
    %s108 = sphi 0, %s107
    %s124 = sphi 0, %s108
    %s130 = sphi 0, %s132
    %s133 = sphi 0, %s130
    %s134 = sphi 0, %s133
    %s150 = sphi 0, %s134
    %s156 = sphi 0, %s158
    %s159 = sphi 0, %s156
    %s160 = sphi 0, %s159
    %s176 = sphi 0, %s160
  $region4: #{conv_module_forward.2} parent=0 // loop_header_branch
    %15 = sbr.rel (%p13) target = $region8
  $region5: #{conv_module_forward.2} parent=0 // loop_body
    %s17 = ssub.s32 %s12, 1
    %s18 = ssub.s32 %s12, 2
    %s25 = sadd.s32 1, %s20
    %p26 = scmp.ge.s32.totalorder %s25, 1
    %s27 = scalar_select %p26, 0, %s25
    %s28 = sadd.s32 1, %s19
    %s29 = scalar_select %p26, %s28, %s19
    %p30 = scmp.ge.s32.totalorder %s29, 2
    %s31 = scalar_select %p30, 0, %s29
    %s33 = sadd.s32 %s32, 1
    %p36 = scmp.eq.s32.totalorder %s12, 1
    %p37 = scmp.ne.s32.totalorder %s32, %s34
    %p38 = scmp.eq.s32.totalorder %s12, 0
    %p39 = por %p37, %p38
    %p40 = scmp.ne.s32.totalorder %s32, %s34
    %p41 = scmp.eq.s32.totalorder %s17, 1
    %p42 = por %p40, %p41
    %p43 = scmp.ne.s32.totalorder %s34, %s35
    %p44 = scmp.eq.s32.totalorder %s17, 0
    %p45 = por %p43, %p44
    %p46 = scmp.ne.s32.totalorder %s34, %s35
    %p47 = scmp.eq.s32.totalorder %s18, 1
    %p48 = por %p46, %p47
    %p50 = scmp.ne.s32.totalorder %s35, %s49
    %p51 = scmp.eq.s32.totalorder %s18, 0
    %p52 = por %p50, %p51
    %s53 = ssub.s32 %s19, %s31
    %s54 = ssub.s32 %s20, %s27
    %s55 = sor.u32 %s53, %s54
    %p56 = scmp.eq.s32.totalorder %s55, 0
    %s58 = sadd.s32 %s57, 1
    %s59 = scalar_select %p56, %s57, %s58
    %p62 = pneg %p56
    %p63 = scmp.eq.s32.totalorder %s12, 1
    %p64 = por %p62, %p63
    %p65 = scmp.ne.s32.totalorder %s57, %s60
    %p66 = scmp.eq.s32.totalorder %s12, 0
    %p67 = por %p65, %p66
    %p68 = scmp.ne.s32.totalorder %s57, %s60
    %p69 = scmp.eq.s32.totalorder %s17, 1
    %p70 = por %p68, %p69
    %p71 = scmp.ne.s32.totalorder %s60, %s61
    %p72 = scmp.eq.s32.totalorder %s17, 0
    %p73 = por %p71, %p72
    %p74 = scmp.ne.s32.totalorder %s60, %s61
    %p75 = scmp.eq.s32.totalorder %s18, 1
    %p76 = por %p74, %p75
    %p78 = scmp.ne.s32.totalorder %s61, %s77
    %p79 = scmp.eq.s32.totalorder %s18, 0
    %p80 = por %p78, %p79
    %s82 = sadd.s32 %s81, 1
    %p85 = scmp.eq.s32.totalorder %s12, 1
    %p86 = scmp.ne.s32.totalorder %s81, %s83
    %p87 = scmp.eq.s32.totalorder %s12, 0
    %p88 = por %p86, %p87
    %p89 = scmp.ne.s32.totalorder %s81, %s83
    %p90 = scmp.eq.s32.totalorder %s17, 1
    %p91 = por %p89, %p90
    %p92 = scmp.ne.s32.totalorder %s83, %s84
    %p93 = scmp.eq.s32.totalorder %s17, 0
    %p94 = por %p92, %p93
    %p95 = scmp.ne.s32.totalorder %s83, %s84
    %p96 = scmp.eq.s32.totalorder %s18, 1
    %p97 = por %p95, %p96
    %p99 = scmp.ne.s32.totalorder %s84, %s98
    %p100 = scmp.eq.s32.totalorder %s18, 0
    %p101 = por %p99, %p100
    %s102 = ssub.s32 %s19, %s31
    %p103 = scmp.eq.s32.totalorder %s102, 0
    %s105 = sadd.s32 %s104, 1
    %s106 = scalar_select %p103, %s104, %s105
    %p109 = pneg %p103
    %p110 = scmp.eq.s32.totalorder %s12, 1
    %p111 = por %p109, %p110
    %p112 = scmp.ne.s32.totalorder %s104, %s107
    %p113 = scmp.eq.s32.totalorder %s12, 0
    %p114 = por %p112, %p113
    %p115 = scmp.ne.s32.totalorder %s104, %s107
    %p116 = scmp.eq.s32.totalorder %s17, 1
    %p117 = por %p115, %p116
    %p118 = scmp.ne.s32.totalorder %s107, %s108
    %p119 = scmp.eq.s32.totalorder %s17, 0
    %p120 = por %p118, %p119
    %p121 = scmp.ne.s32.totalorder %s107, %s108
    %p122 = scmp.eq.s32.totalorder %s18, 1
    %p123 = por %p121, %p122
    %p125 = scmp.ne.s32.totalorder %s108, %s124
    %p126 = scmp.eq.s32.totalorder %s18, 0
    %p127 = por %p125, %p126
    %s128 = ssub.s32 %s19, %s31
    %p129 = scmp.eq.s32.totalorder %s128, 0
    %s131 = sadd.s32 %s130, 1
    %s132 = scalar_select %p129, %s130, %s131
    %p135 = pneg %p129
    %p136 = scmp.eq.s32.totalorder %s12, 1
    %p137 = por %p135, %p136
    %p138 = scmp.ne.s32.totalorder %s130, %s133
    %p139 = scmp.eq.s32.totalorder %s12, 0
    %p140 = por %p138, %p139
    %p141 = scmp.ne.s32.totalorder %s130, %s133
    %p142 = scmp.eq.s32.totalorder %s17, 1
    %p143 = por %p141, %p142
    %p144 = scmp.ne.s32.totalorder %s133, %s134
    %p145 = scmp.eq.s32.totalorder %s17, 0
    %p146 = por %p144, %p145
    %p147 = scmp.ne.s32.totalorder %s133, %s134
    %p148 = scmp.eq.s32.totalorder %s18, 1
    %p149 = por %p147, %p148
    %p151 = scmp.ne.s32.totalorder %s134, %s150
    %p152 = scmp.eq.s32.totalorder %s18, 0
    %p153 = por %p151, %p152
    %s154 = ssub.s32 %s19, %s31
    %p155 = scmp.eq.s32.totalorder %s154, 0
    %s157 = sadd.s32 %s156, 1
    %s158 = scalar_select %p155, %s156, %s157
    %p161 = pneg %p155
    %p162 = scmp.eq.s32.totalorder %s12, 1
    %p163 = por %p161, %p162
    %p164 = scmp.ne.s32.totalorder %s156, %s159
    %p165 = scmp.eq.s32.totalorder %s12, 0
    %p166 = por %p164, %p165
    %p167 = scmp.ne.s32.totalorder %s156, %s159
    %p168 = scmp.eq.s32.totalorder %s17, 1
    %p169 = por %p167, %p168
    %p170 = scmp.ne.s32.totalorder %s159, %s160
    %p171 = scmp.eq.s32.totalorder %s17, 0
    %p172 = por %p170, %p171
    %p173 = scmp.ne.s32.totalorder %s159, %s160
    %p174 = scmp.eq.s32.totalorder %s18, 1
    %p175 = por %p173, %p174
    %p177 = scmp.ne.s32.totalorder %s160, %s176
    %p178 = scmp.eq.s32.totalorder %s18, 0
    %p179 = por %p177, %p178
    %p180 = scmp.le.s32.totalorder 1, %s12
    %p181 = scmp.lt.s32.totalorder %s12, 3
    %p182 = pnand %p180, %p181
    %p183 = pneg %p182
    // Predicated region
    $region9: #{conv_module_forward.2} parent=5 // pred_check
      _
    $region10: #{conv_module_forward.2} parent=5 // pred_check_branch
      %185 = sbr.rel (%p182) target = $region12
    $region11: #{conv_module_forward.2} parent=5 // pred_region
      %s186 = ssub.s32 %s12, 1
      // Predicated region
      $region13: #{conv_module_forward.2} parent=11 // pred_check
        %p187 = pneg %p45
      $region14: #{conv_module_forward.2} parent=11 // pred_check_branch
        %189 = sbr.rel (%p187) target = $region16
      $region15: #{conv_module_forward.2} parent=11 // pred_region
        _
      $region16: #{conv_module_forward.2} parent=11 // pred_fallthru
        _
      // Predicated region
      $region17: #{conv_module_forward.2} parent=11 // pred_check
        %p190 = pneg %p94
      $region18: #{conv_module_forward.2} parent=11 // pred_check_branch
        %192 = sbr.rel (%p190) target = $region20
      $region19: #{conv_module_forward.2} parent=11 // pred_region
        _
      $region20: #{conv_module_forward.2} parent=11 // pred_fallthru
        _
    $region12: #{conv_module_forward.2} parent=5 // pred_fallthru
      _
    %p193 = scmp.lt.s32.totalorder %s12, 2
    // Predicated region
    $region21: #{conv_module_forward.2} parent=5 // pred_check
      %p194 = pneg %p193
    $region22: #{conv_module_forward.2} parent=5 // pred_check_branch
      %196 = sbr.rel (%p194) target = $region24
    $region23: #{conv_module_forward.2} parent=5 // pred_region
      // Predicated region
      $region25: #{conv_module_forward.2} parent=23 // pred_check
        %p197 = pneg %p67
      $region26: #{conv_module_forward.2} parent=23 // pred_check_branch
        %199 = sbr.rel (%p197) target = $region28
      $region27: #{conv_module_forward.2} parent=23 // pred_region
        %s200 = smul.u32 32, %s19
        %p201 = scmp.lt.s32.totalorder %s200, 63
        %s202 = scalar_select %p201, %s200, 63
        %p203 = scmp.lt.s32.totalorder %s20, 0
        %s204 = scalar_select %p203, %s20, 0
        %s205 = sadd.s32 %s204, %s202
        %s206 = smul.addr %s205, 8
        %s207 = scalar_lea.vmem %s1, %s206
        %s208 = smul.u32 32, %s19
      $region28: #{conv_module_forward.2} parent=23 // pred_fallthru
        _
    $region24: #{conv_module_forward.2} parent=5 // pred_fallthru
      _
    %p209 = scmp.le.s32.totalorder 1, %s12
    %p210 = scmp.lt.s32.totalorder %s12, 3
    %p211 = pnand %p209, %p210
    %p212 = pneg %p211
    // Predicated region
    $region29: #{conv_module_forward.2} parent=5 // pred_check
      _
    $region30: #{conv_module_forward.2} parent=5 // pred_check_branch
      %214 = sbr.rel (%p211) target = $region32
    $region31: #{conv_module_forward.2} parent=5 // pred_region
      %s215 = ssub.s32 %s12, 1
      %p216 = pneg %p45
      %p217 = pneg %p42
      %s218 = smul.u32 32, %s21
      %p219 = scmp.lt.s32.totalorder %s218, 63
      %s220 = scalar_select %p219, %s218, 63
      %p221 = scmp.lt.s32.totalorder %s22, 0
      %s222 = scalar_select %p221, %s22, 0
      %s223 = sadd.s32 %s222, %s220
      %s224 = smul.addr %s223, 8
      %s225 = scalar_lea.vmem %s1, %s224
      %p226 = pneg %p73
      %p227 = pneg %p70
      %p228 = pneg %p94
      %p229 = pneg %p91
      %p230 = pneg %p120
      %p231 = pneg %p117
      %s232 = smul.u32 32, %s21
      %p233 = scmp.lt.s32.totalorder %s232, 63
      %s234 = scalar_select %p233, %s232, 63
      %s235 = smul.addr %s234, 8
      %s236 = scalar_lea.vmem %s3, %s235
      %p237 = pneg %p146
      %p238 = pneg %p143
      %p239 = scmp.lt.s32.totalorder %s21, 1
      %s240 = scalar_select %p239, %s21, 1
      %s241 = smul.addr %s240, 8
      %s242 = scalar_lea.vmem %s4, %s241
      %p243 = pneg %p172
      %p244 = pneg %p169
      %p245 = scmp.lt.s32.totalorder %s21, 1
      %s246 = scalar_select %p245, %s21, 1
      %s247 = smul.addr %s246, 8
      %s248 = scalar_lea.vmem %s5, %s247
      %s249 = smul.u32 32, %s21
      %p250 = scmp.lt.s32.totalorder %s249, 63
      %s251 = scalar_select %p250, %s249, 63
      %p252 = scmp.lt.s32.totalorder %s22, 0
      %s253 = scalar_select %p252, %s22, 0
      %s254 = sadd.s32 %s253, %s251
      %s255 = smul.addr %s254, 8
      %s256 = scalar_lea.vmem %s1, %s255
      %s257 = smul.u32 32, %s21
      %s258 = smul.u32 32, %s21
      %p259 = scmp.lt.s32.totalorder %s258, 63
      %s260 = scalar_select %p259, %s258, 63
      %s261 = smul.addr %s260, 8
      %s262 = scalar_lea.vmem %s3, %s261
      %s263 = smul.u32 32, %s21
      %p264 = scmp.lt.s32.totalorder %s21, 1
      %s265 = scalar_select %p264, %s21, 1
      %s266 = smul.addr %s265, 8
      %s267 = scalar_lea.vmem %s4, %s266
      %p268 = scmp.lt.s32.totalorder %s21, 1
      %s269 = scalar_select %p268, %s21, 1
      %s270 = smul.addr %s269, 8
      %s271 = scalar_lea.vmem %s5, %s270
      %v272 = vld [vmem:[%s2] sm:$0xff]
      %v273 = vld [vmem:[%s2 + $0x8] sm:$0xff]
      %v274 = vld [vmem:[%s2 + $0x10] sm:$0xff]
      %v275 = vld [vmem:[%s2 + $0x18] sm:$0xff]
      %v276 = vld [vmem:[%s2 + $0x20] sm:$0xff]
      %v277 = vld [vmem:[%s2 + $0x28] sm:$0xff]
      %v278 = vld [vmem:[%s2 + $0x30] sm:$0xff]
      %v279 = vld [vmem:[%s2 + $0x38] sm:$0xff]
      %v280 = vld [vmem:[%s2 + $0x40] sm:$0xff]
      %v281 = vld [vmem:[%s2 + $0x48] sm:$0xff]
      %v282 = vld [vmem:[%s2 + $0x50] sm:$0xff]
      %v283 = vld [vmem:[%s2 + $0x58] sm:$0xff]
      %v284 = vld [vmem:[%s2 + $0x60] sm:$0xff]
      %v285 = vld [vmem:[%s2 + $0x68] sm:$0xff]
      %v286 = vld [vmem:[%s2 + $0x70] sm:$0xff]
      %v287 = vld [vmem:[%s2 + $0x78] sm:$0xff]
      %v288 = vld [vmem:[%s256] sm:$0xff]
      %v289 = vld [vmem:[%s256 + $0x8] sm:$0xff]
      %v290 = vld [vmem:[%s256 + $0x10] sm:$0xff]
      %v291 = vld [vmem:[%s256 + $0x18] sm:$0xff]
      %v292 = vld [vmem:[%s256 + $0x20] sm:$0xff]
      %v293 = vld [vmem:[%s256 + $0x28] sm:$0xff]
      %v294 = vld [vmem:[%s256 + $0x30] sm:$0xff]
      %v295 = vld [vmem:[%s256 + $0x38] sm:$0xff]
      %v296 = vld [vmem:[%s256 + $0x40] sm:$0xff]
      %v297 = vld [vmem:[%s256 + $0x48] sm:$0xff]
      %v298 = vld [vmem:[%s256 + $0x50] sm:$0xff]
      %v299 = vld [vmem:[%s256 + $0x58] sm:$0xff]
      %v300 = vld [vmem:[%s256 + $0x60] sm:$0xff]
      %v301 = vld [vmem:[%s256 + $0x68] sm:$0xff]
      %v302 = vld [vmem:[%s256 + $0x70] sm:$0xff]
      %v303 = vld [vmem:[%s256 + $0x78] sm:$0xff]
      %v304 = vld [vmem:[%s256 + $0x80] sm:$0xff]
      %v305 = vld [vmem:[%s256 + $0x88] sm:$0xff]
      %v306 = vld [vmem:[%s256 + $0x90] sm:$0xff]
      %v307 = vld [vmem:[%s256 + $0x98] sm:$0xff]
      %v308 = vld [vmem:[%s256 + $0xa0] sm:$0xff]
      %v309 = vld [vmem:[%s256 + $0xa8] sm:$0xff]
      %v310 = vld [vmem:[%s256 + $0xb0] sm:$0xff]
      %v311 = vld [vmem:[%s256 + $0xb8] sm:$0xff]
      %v312 = vld [vmem:[%s256 + $0xc0] sm:$0xff]
      %v313 = vld [vmem:[%s256 + $0xc8] sm:$0xff]
      %v314 = vld [vmem:[%s256 + $0xd0] sm:$0xff]
      %v315 = vld [vmem:[%s256 + $0xd8] sm:$0xff]
      %v316 = vld [vmem:[%s256 + $0xe0] sm:$0xff]
      %v317 = vld [vmem:[%s256 + $0xe8] sm:$0xff]
      %v318 = vld [vmem:[%s256 + $0xf0] sm:$0xff]
      %v319 = vld [vmem:[%s256 + $0xf8] sm:$0xff]
      %320 = vmatprep.subr.mxu0 0.0
      %321 = vmatpush1.msra.mxu0 %v272
      %322 = vmatprep.subr.mxu0 0.0
      %323 = vmatpush1.msra.mxu0 %v273
      %324 = vmatprep.subr.mxu0 0.0
      %325 = vmatpush1.msra.mxu0 %v274
      %326 = vmatprep.subr.mxu0 0.0
      %327 = vmatpush1.msra.mxu0 %v275
      %328 = vmatprep.subr.mxu0 0.0
      %329 = vmatpush1.msra.mxu0 %v276
      %330 = vmatprep.subr.mxu0 0.0
      %331 = vmatpush1.msra.mxu0 %v277
      %332 = vmatprep.subr.mxu0 0.0
      %333 = vmatpush1.msra.mxu0 %v278
      %334 = vmatprep.subr.mxu0 0.0
      %335 = vmatpush1.msra.mxu0 %v279
      %336 = vmatprep.subr.mxu0 0.0
      %337 = vmatpush1.msra.mxu0 %v280
      %338 = vmatprep.subr.mxu0 0.0
      %339 = vmatpush1.msra.mxu0 %v281
      %340 = vmatprep.subr.mxu0 0.0
      %341 = vmatpush1.msra.mxu0 %v282
      %342 = vmatprep.subr.mxu0 0.0
      %343 = vmatpush1.msra.mxu0 %v283
      %344 = vmatprep.subr.mxu0 0.0
      %345 = vmatpush1.msra.mxu0 %v284
      %346 = vmatprep.subr.mxu0 0.0
      %347 = vmatpush1.msra.mxu0 %v285
      %348 = vmatprep.subr.mxu0 0.0
      %349 = vmatpush1.msra.mxu0 %v286
      %350 = vmatprep.subr.mxu0 0.0
      %351 = vmatpush1.msra.mxu0 %v287
      %352 = vmatprep.subr.mxu0 0.0
      %353 = vmatpush1.msra.mxu0 0.0
      %354 = vmatprep.subr.mxu0 0.0
      %355 = vmatpush1.msra.mxu0 0.0
      %356 = vmatprep.subr.mxu0 0.0
      %357 = vmatpush1.msra.mxu0 0.0
      %358 = vmatprep.subr.mxu0 0.0
      %359 = vmatpush1.msra.mxu0 0.0
      %360 = vmatprep.subr.mxu0 0.0
      %361 = vmatpush1.msra.mxu0 0.0
      %362 = vmatprep.subr.mxu0 0.0
      %363 = vmatpush1.msra.mxu0 0.0
      %364 = vmatprep.subr.mxu0 0.0
      %365 = vmatpush1.msra.mxu0 0.0
      %366 = vmatprep.subr.mxu0 0.0
      %367 = vmatpush1.msra.mxu0 0.0
      %368 = vmatprep.subr.mxu0 0.0
      %369 = vmatpush1.msra.mxu0 0.0
      %370 = vmatprep.subr.mxu0 0.0
      %371 = vmatpush1.msra.mxu0 0.0
      %372 = vmatprep.subr.mxu0 0.0
      %373 = vmatpush1.msra.mxu0 0.0
      %374 = vmatprep.subr.mxu0 0.0
      %375 = vmatpush1.msra.mxu0 0.0
      %376 = vmatprep.subr.mxu0 0.0
      %377 = vmatpush1.msra.mxu0 0.0
      %378 = vmatprep.subr.mxu0 0.0
      %379 = vmatpush1.msra.mxu0 0.0
      %380 = vmatprep.subr.mxu0 0.0
      %381 = vmatpush1.msra.mxu0 0.0
      %382 = vmatprep.subr.mxu0 0.0
      %383 = vmatpush1.msra.mxu0 0.0
      %384 = vmatprep.mubr.f32.mxu0 0.0
      %385 = vmatmul.mubr.f32.gmra.mrb[0].mxu0 %v288
      %v386 = vpop.f32.mrb[0].mxu0
      %v387 = vadd.f32 0.0, %v386
      %v388 = vpop.f32.mrb[0].mxu0
      %389 = vmatprep.mubr.f32.mxu0 0.0
      %390 = vmatmul.mubr.f32.gmra.mrb[0].mxu0 %v289
      %v391 = vpop.f32.mrb[0].mxu0
      %v392 = vadd.f32 0.0, %v391
      %v393 = vpop.f32.mrb[0].mxu0
      %394 = vmatprep.mubr.f32.mxu0 0.0
      %395 = vmatmul.mubr.f32.gmra.mrb[0].mxu0 %v290
      %v396 = vpop.f32.mrb[0].mxu0
      %v397 = vadd.f32 0.0, %v396
      %v398 = vpop.f32.mrb[0].mxu0
      %399 = vmatprep.mubr.f32.mxu0 0.0
      %400 = vmatmul.mubr.f32.gmra.mrb[0].mxu0 %v291
      %v401 = vpop.f32.mrb[0].mxu0
      %v402 = vadd.f32 0.0, %v401
      %v403 = vpop.f32.mrb[0].mxu0
      %404 = vmatprep.mubr.f32.mxu0 0.0
      %405 = vmatmul.mubr.f32.gmra.mrb[0].mxu0 %v292
      %v406 = vpop.f32.mrb[0].mxu0
      %v407 = vadd.f32 0.0, %v406
      %v408 = vpop.f32.mrb[0].mxu0
      %409 = vmatprep.mubr.f32.mxu0 0.0
      %410 = vmatmul.mubr.f32.gmra.mrb[0].mxu0 %v293
      %v411 = vpop.f32.mrb[0].mxu0
      %v412 = vadd.f32 0.0, %v411
      %v413 = vpop.f32.mrb[0].mxu0
      %414 = vmatprep.mubr.f32.mxu0 0.0
      %415 = vmatmul.mubr.f32.gmra.mrb[0].mxu0 %v294
      %v416 = vpop.f32.mrb[0].mxu0
      %v417 = vadd.f32 0.0, %v416
      %v418 = vpop.f32.mrb[0].mxu0
      %419 = vmatprep.mubr.f32.mxu0 0.0
      %420 = vmatmul.mubr.f32.gmra.mrb[0].mxu0 %v295
      %v421 = vpop.f32.mrb[0].mxu0
      %v422 = vadd.f32 0.0, %v421
      %v423 = vpop.f32.mrb[0].mxu0
      %424 = vmatprep.mubr.f32.mxu0 0.0
      %425 = vmatmul.mubr.f32.gmra.mrb[0].mxu0 %v296
      %v426 = vpop.f32.mrb[0].mxu0
      %v427 = vadd.f32 0.0, %v426
      %v428 = vpop.f32.mrb[0].mxu0
      %429 = vmatprep.mubr.f32.mxu0 0.0
      %430 = vmatmul.mubr.f32.gmra.mrb[0].mxu0 %v297
      %v431 = vpop.f32.mrb[0].mxu0
      %v432 = vadd.f32 0.0, %v431
      %v433 = vpop.f32.mrb[0].mxu0
      %434 = vmatprep.mubr.f32.mxu0 0.0
      %435 = vmatmul.mubr.f32.gmra.mrb[0].mxu0 %v298
      %v436 = vpop.f32.mrb[0].mxu0
      %v437 = vadd.f32 0.0, %v436
      %v438 = vpop.f32.mrb[0].mxu0
      %439 = vmatprep.mubr.f32.mxu0 0.0
      %440 = vmatmul.mubr.f32.gmra.mrb[0].mxu0 %v299
      %v441 = vpop.f32.mrb[0].mxu0
      %v442 = vadd.f32 0.0, %v441
      %v443 = vpop.f32.mrb[0].mxu0
      %444 = vmatprep.mubr.f32.mxu0 0.0
      %445 = vmatmul.mubr.f32.gmra.mrb[0].mxu0 %v300
      %v446 = vpop.f32.mrb[0].mxu0
      %v447 = vadd.f32 0.0, %v446
      %v448 = vpop.f32.mrb[0].mxu0
      %449 = vmatprep.mubr.f32.mxu0 0.0
      %450 = vmatmul.mubr.f32.gmra.mrb[0].mxu0 %v301
      %v451 = vpop.f32.mrb[0].mxu0
      %v452 = vadd.f32 0.0, %v451
      %v453 = vpop.f32.mrb[0].mxu0
      %454 = vmatprep.mubr.f32.mxu0 0.0
      %455 = vmatmul.mubr.f32.gmra.mrb[0].mxu0 %v302
      %v456 = vpop.f32.mrb[0].mxu0
      %v457 = vadd.f32 0.0, %v456
      %v458 = vpop.f32.mrb[0].mxu0
      %459 = vmatprep.mubr.f32.mxu0 0.0
      %460 = vmatmul.mubr.f32.gmra.mrb[0].mxu0 %v303
      %v461 = vpop.f32.mrb[0].mxu0
      %v462 = vadd.f32 0.0, %v461
      %v463 = vpop.f32.mrb[0].mxu0
      %464 = vmatprep.mubr.f32.mxu0 0.0
      %465 = vmatmul.mubr.f32.gmra.mrb[0].mxu0 %v304
      %v466 = vpop.f32.mrb[0].mxu0
      %v467 = vadd.f32 0.0, %v466
      %v468 = vpop.f32.mrb[0].mxu0
      %469 = vmatprep.mubr.f32.mxu0 0.0
      %470 = vmatmul.mubr.f32.gmra.mrb[0].mxu0 %v305
      %v471 = vpop.f32.mrb[0].mxu0
      %v472 = vadd.f32 0.0, %v471
      %v473 = vpop.f32.mrb[0].mxu0
      %474 = vmatprep.mubr.f32.mxu0 0.0
      %475 = vmatmul.mubr.f32.gmra.mrb[0].mxu0 %v306
      %v476 = vpop.f32.mrb[0].mxu0
      %v477 = vadd.f32 0.0, %v476
      %v478 = vpop.f32.mrb[0].mxu0
      %479 = vmatprep.mubr.f32.mxu0 0.0
      %480 = vmatmul.mubr.f32.gmra.mrb[0].mxu0 %v307
      %v481 = vpop.f32.mrb[0].mxu0
      %v482 = vadd.f32 0.0, %v481
      %v483 = vpop.f32.mrb[0].mxu0
      %484 = vmatprep.mubr.f32.mxu0 0.0
      %485 = vmatmul.mubr.f32.gmra.mrb[0].mxu0 %v308
      %v486 = vpop.f32.mrb[0].mxu0
      %v487 = vadd.f32 0.0, %v486
      %v488 = vpop.f32.mrb[0].mxu0
      %489 = vmatprep.mubr.f32.mxu0 0.0
      %490 = vmatmul.mubr.f32.gmra.mrb[0].mxu0 %v309
      %v491 = vpop.f32.mrb[0].mxu0
      %v492 = vadd.f32 0.0, %v491
      %v493 = vpop.f32.mrb[0].mxu0
      %494 = vmatprep.mubr.f32.mxu0 0.0
      %495 = vmatmul.mubr.f32.gmra.mrb[0].mxu0 %v310
      %v496 = vpop.f32.mrb[0].mxu0
      %v497 = vadd.f32 0.0, %v496
      %v498 = vpop.f32.mrb[0].mxu0
      %499 = vmatprep.mubr.f32.mxu0 0.0
      %500 = vmatmul.mubr.f32.gmra.mrb[0].mxu0 %v311
      %v501 = vpop.f32.mrb[0].mxu0
      %v502 = vadd.f32 0.0, %v501
      %v503 = vpop.f32.mrb[0].mxu0
      %504 = vmatprep.mubr.f32.mxu0 0.0
      %505 = vmatmul.mubr.f32.gmra.mrb[0].mxu0 %v312
      %v506 = vpop.f32.mrb[0].mxu0
      %v507 = vadd.f32 0.0, %v506
      %v508 = vpop.f32.mrb[0].mxu0
      %509 = vmatprep.mubr.f32.mxu0 0.0
      %510 = vmatmul.mubr.f32.gmra.mrb[0].mxu0 %v313
      %v511 = vpop.f32.mrb[0].mxu0
      %v512 = vadd.f32 0.0, %v511
      %v513 = vpop.f32.mrb[0].mxu0
      %514 = vmatprep.mubr.f32.mxu0 0.0
      %515 = vmatmul.mubr.f32.gmra.mrb[0].mxu0 %v314
      %v516 = vpop.f32.mrb[0].mxu0
      %v517 = vadd.f32 0.0, %v516
      %v518 = vpop.f32.mrb[0].mxu0
      %519 = vmatprep.mubr.f32.mxu0 0.0
      %520 = vmatmul.mubr.f32.gmra.mrb[0].mxu0 %v315
      %v521 = vpop.f32.mrb[0].mxu0
      %v522 = vadd.f32 0.0, %v521
      %v523 = vpop.f32.mrb[0].mxu0
      %524 = vmatprep.mubr.f32.mxu0 0.0
      %525 = vmatmul.mubr.f32.gmra.mrb[0].mxu0 %v316
      %v526 = vpop.f32.mrb[0].mxu0
      %v527 = vadd.f32 0.0, %v526
      %v528 = vpop.f32.mrb[0].mxu0
      %529 = vmatprep.mubr.f32.mxu0 0.0
      %530 = vmatmul.mubr.f32.gmra.mrb[0].mxu0 %v317
      %v531 = vpop.f32.mrb[0].mxu0
      %v532 = vadd.f32 0.0, %v531
      %v533 = vpop.f32.mrb[0].mxu0
      %534 = vmatprep.mubr.f32.mxu0 0.0
      %535 = vmatmul.mubr.f32.gmra.mrb[0].mxu0 %v318
      %v536 = vpop.f32.mrb[0].mxu0
      %v537 = vadd.f32 0.0, %v536
      %v538 = vpop.f32.mrb[0].mxu0
      %539 = vmatprep.mubr.f32.mxu0 0.0
      %540 = vmatmul.mubr.f32.gmra.mrb[0].mxu0 %v319
      %v541 = vpop.f32.mrb[0].mxu0
      %v542 = vadd.f32 0.0, %v541
      %v543 = vpop.f32.mrb[0].mxu0
      %544 = vdwg.mxu0
      %545 = vst [vmem:[%s262] sm:$0xff] %v387
      %546 = vst [vmem:[%s262 + $0x8] sm:$0xff] %v392
      %547 = vst [vmem:[%s262 + $0x10] sm:$0xff] %v397
      %548 = vst [vmem:[%s262 + $0x18] sm:$0xff] %v402
      %549 = vst [vmem:[%s262 + $0x20] sm:$0xff] %v407
      %550 = vst [vmem:[%s262 + $0x28] sm:$0xff] %v412
      %551 = vst [vmem:[%s262 + $0x30] sm:$0xff] %v417
      %552 = vst [vmem:[%s262 + $0x38] sm:$0xff] %v422
      %553 = vst [vmem:[%s262 + $0x40] sm:$0xff] %v427
      %554 = vst [vmem:[%s262 + $0x48] sm:$0xff] %v432
      %555 = vst [vmem:[%s262 + $0x50] sm:$0xff] %v437
      %556 = vst [vmem:[%s262 + $0x58] sm:$0xff] %v442
      %557 = vst [vmem:[%s262 + $0x60] sm:$0xff] %v447
      %558 = vst [vmem:[%s262 + $0x68] sm:$0xff] %v452
      %559 = vst [vmem:[%s262 + $0x70] sm:$0xff] %v457
      %560 = vst [vmem:[%s262 + $0x78] sm:$0xff] %v462
      %561 = vst [vmem:[%s262 + $0x80] sm:$0xff] %v467
      %562 = vst [vmem:[%s262 + $0x88] sm:$0xff] %v472
      %563 = vst [vmem:[%s262 + $0x90] sm:$0xff] %v477
      %564 = vst [vmem:[%s262 + $0x98] sm:$0xff] %v482
      %565 = vst [vmem:[%s262 + $0xa0] sm:$0xff] %v487
      %566 = vst [vmem:[%s262 + $0xa8] sm:$0xff] %v492
      %567 = vst [vmem:[%s262 + $0xb0] sm:$0xff] %v497
      %568 = vst [vmem:[%s262 + $0xb8] sm:$0xff] %v502
      %569 = vst [vmem:[%s262 + $0xc0] sm:$0xff] %v507
      %570 = vst [vmem:[%s262 + $0xc8] sm:$0xff] %v512
      %571 = vst [vmem:[%s262 + $0xd0] sm:$0xff] %v517
      %572 = vst [vmem:[%s262 + $0xd8] sm:$0xff] %v522
      %573 = vst [vmem:[%s262 + $0xe0] sm:$0xff] %v527
      %574 = vst [vmem:[%s262 + $0xe8] sm:$0xff] %v532
      %575 = vst [vmem:[%s262 + $0xf0] sm:$0xff] %v537
      %576 = vst [vmem:[%s262 + $0xf8] sm:$0xff] %v542
      %v577 = vld [vmem:[%s0] sm:$0x1]
      %v579 = vlaneseq
      %v580 = vshrl.u32 %v579, 7
      %v581 = vsub.s32 0, %v580
      %v582 = vrot.slane %v577, %v581
      %v584 = vsub.f32 %v387, %v582
      %v585 = vsub.f32 %v392, %v582
      %v586 = vsub.f32 %v397, %v582
      %v587 = vsub.f32 %v402, %v582
      %v588 = vsub.f32 %v407, %v582
      %v589 = vsub.f32 %v412, %v582
      %v590 = vsub.f32 %v417, %v582
      %v591 = vsub.f32 %v422, %v582
      %v592 = vsub.f32 %v427, %v582
      %v593 = vsub.f32 %v432, %v582
      %v594 = vsub.f32 %v437, %v582
      %v595 = vsub.f32 %v442, %v582
      %v596 = vsub.f32 %v447, %v582
      %v597 = vsub.f32 %v452, %v582
      %v598 = vsub.f32 %v457, %v582
      %v599 = vsub.f32 %v462, %v582
      %v600 = vsub.f32 %v467, %v582
      %v601 = vsub.f32 %v472, %v582
      %v602 = vsub.f32 %v477, %v582
      %v603 = vsub.f32 %v482, %v582
      %v604 = vsub.f32 %v487, %v582
      %v605 = vsub.f32 %v492, %v582
      %v606 = vsub.f32 %v497, %v582
      %v607 = vsub.f32 %v502, %v582
      %v608 = vsub.f32 %v507, %v582
      %v609 = vsub.f32 %v512, %v582
      %v610 = vsub.f32 %v517, %v582
      %v611 = vsub.f32 %v522, %v582
      %v612 = vsub.f32 %v527, %v582
      %v613 = vsub.f32 %v532, %v582
      %v614 = vsub.f32 %v537, %v582
      %v615 = vsub.f32 %v542, %v582
      %v616 = vadd.f32 %v584, %v585
      %v617 = vadd.f32 %v616, %v586
      %v618 = vadd.f32 %v617, %v587
      %v619 = vadd.f32 %v618, %v588
      %v620 = vadd.f32 %v619, %v589
      %v621 = vadd.f32 %v620, %v590
      %v622 = vadd.f32 %v621, %v591
      %v623 = vadd.f32 %v622, %v592
      %v624 = vadd.f32 %v623, %v593
      %v625 = vadd.f32 %v624, %v594
      %v626 = vadd.f32 %v625, %v595
      %v627 = vadd.f32 %v626, %v596
      %v628 = vadd.f32 %v627, %v597
      %v629 = vadd.f32 %v628, %v598
      %v630 = vadd.f32 %v629, %v599
      %v631 = vadd.f32 %v630, %v600
      %v632 = vadd.f32 %v631, %v601
      %v633 = vadd.f32 %v632, %v602
      %v634 = vadd.f32 %v633, %v603
      %v635 = vadd.f32 %v634, %v604
      %v636 = vadd.f32 %v635, %v605
      %v637 = vadd.f32 %v636, %v606
      %v638 = vadd.f32 %v637, %v607
      %v639 = vadd.f32 %v638, %v608
      %v640 = vadd.f32 %v639, %v609
      %v641 = vadd.f32 %v640, %v610
      %v642 = vadd.f32 %v641, %v611
      %v643 = vadd.f32 %v642, %v612
      %v644 = vadd.f32 %v643, %v613
      %v645 = vadd.f32 %v644, %v614
      %v646 = vadd.f32 %v645, %v615
      %v647 = vrot.slane %v646, 4
      %v648 = vadd.f32 %v646, %v647
      %v649 = vrot.slane %v648, 2
      %v650 = vadd.f32 %v648, %v649
      %v651 = vrot.slane %v650, 1
      %v652 = vadd.f32 %v650, %v651
      %653 = vst [vmem:[%s267] sm:$0x1] %v652
      %v654 = vmul.f32 %v584, %v584
      %v655 = vmul.f32 %v585, %v585
      %v656 = vmul.f32 %v586, %v586
      %v657 = vmul.f32 %v587, %v587
      %v658 = vmul.f32 %v588, %v588
      %v659 = vmul.f32 %v589, %v589
      %v660 = vmul.f32 %v590, %v590
      %v661 = vmul.f32 %v591, %v591
      %v662 = vmul.f32 %v592, %v592
      %v663 = vmul.f32 %v593, %v593
      %v664 = vmul.f32 %v594, %v594
      %v665 = vmul.f32 %v595, %v595
      %v666 = vmul.f32 %v596, %v596
      %v667 = vmul.f32 %v597, %v597
      %v668 = vmul.f32 %v598, %v598
      %v669 = vmul.f32 %v599, %v599
      %v670 = vmul.f32 %v600, %v600
      %v671 = vmul.f32 %v601, %v601
      %v672 = vmul.f32 %v602, %v602
      %v673 = vmul.f32 %v603, %v603
      %v674 = vmul.f32 %v604, %v604
      %v675 = vmul.f32 %v605, %v605
      %v676 = vmul.f32 %v606, %v606
      %v677 = vmul.f32 %v607, %v607
      %v678 = vmul.f32 %v608, %v608
      %v679 = vmul.f32 %v609, %v609
      %v680 = vmul.f32 %v610, %v610
      %v681 = vmul.f32 %v611, %v611
      %v682 = vmul.f32 %v612, %v612
      %v683 = vmul.f32 %v613, %v613
      %v684 = vmul.f32 %v614, %v614
      %v685 = vmul.f32 %v615, %v615
      %v686 = vadd.f32 %v654, %v655
      %v687 = vadd.f32 %v686, %v656
      %v688 = vadd.f32 %v687, %v657
      %v689 = vadd.f32 %v688, %v658
      %v690 = vadd.f32 %v689, %v659
      %v691 = vadd.f32 %v690, %v660
      %v692 = vadd.f32 %v691, %v661
      %v693 = vadd.f32 %v692, %v662
      %v694 = vadd.f32 %v693, %v663
      %v695 = vadd.f32 %v694, %v664
      %v696 = vadd.f32 %v695, %v665
      %v697 = vadd.f32 %v696, %v666
      %v698 = vadd.f32 %v697, %v667
      %v699 = vadd.f32 %v698, %v668
      %v700 = vadd.f32 %v699, %v669
      %v701 = vadd.f32 %v700, %v670
      %v702 = vadd.f32 %v701, %v671
      %v703 = vadd.f32 %v702, %v672
      %v704 = vadd.f32 %v703, %v673
      %v705 = vadd.f32 %v704, %v674
      %v706 = vadd.f32 %v705, %v675
      %v707 = vadd.f32 %v706, %v676
      %v708 = vadd.f32 %v707, %v677
      %v709 = vadd.f32 %v708, %v678
      %v710 = vadd.f32 %v709, %v679
      %v711 = vadd.f32 %v710, %v680
      %v712 = vadd.f32 %v711, %v681
      %v713 = vadd.f32 %v712, %v682
      %v714 = vadd.f32 %v713, %v683
      %v715 = vadd.f32 %v714, %v684
      %v716 = vadd.f32 %v715, %v685
      %v717 = vrot.slane %v716, 4
      %v718 = vadd.f32 %v716, %v717
      %v719 = vrot.slane %v718, 2
      %v720 = vadd.f32 %v718, %v719
      %v721 = vrot.slane %v720, 1
      %v722 = vadd.f32 %v720, %v721
      %723 = vst [vmem:[%s271] sm:$0x1] %v722
      %s724 = smul.u32 32, %s21
      %p725 = scmp.lt.s32.totalorder %s724, 63
      %s726 = scalar_select %p725, %s724, 63
      %s727 = smul.addr %s726, 8
      %s728 = scalar_lea.vmem %s3, %s727
      %p729 = scmp.lt.s32.totalorder %s21, 1
      %s730 = scalar_select %p729, %s21, 1
      %s731 = smul.addr %s730, 8
      %s732 = scalar_lea.vmem %s4, %s731
      %p733 = scmp.lt.s32.totalorder %s21, 1
      %s734 = scalar_select %p733, %s21, 1
      %s735 = smul.addr %s734, 8
      %s736 = scalar_lea.vmem %s5, %s735
      // Predicated region
      $region33: #{conv_module_forward.2} parent=31 // pred_check
        %p737 = pneg %p117
      $region34: #{conv_module_forward.2} parent=31 // pred_check_branch
        %739 = sbr.rel (%p737) target = $region36
      $region35: #{conv_module_forward.2} parent=31 // pred_region
        %s740 = smul.u32 32, %s21
      $region36: #{conv_module_forward.2} parent=31 // pred_fallthru
        _
      // Predicated region
      $region37: #{conv_module_forward.2} parent=31 // pred_check
        %p741 = pneg %p143
      $region38: #{conv_module_forward.2} parent=31 // pred_check_branch
        %743 = sbr.rel (%p741) target = $region40
      $region39: #{conv_module_forward.2} parent=31 // pred_region
        _
      $region40: #{conv_module_forward.2} parent=31 // pred_fallthru
        _
      // Predicated region
      $region41: #{conv_module_forward.2} parent=31 // pred_check
        %p744 = pneg %p169
      $region42: #{conv_module_forward.2} parent=31 // pred_check_branch
        %746 = sbr.rel (%p744) target = $region44
      $region43: #{conv_module_forward.2} parent=31 // pred_region
        _
      $region44: #{conv_module_forward.2} parent=31 // pred_fallthru
        _
    $region32: #{conv_module_forward.2} parent=5 // pred_fallthru
      _
    %p747 = scmp.le.s32.totalorder 2, %s12
    // Predicated region
    $region45: #{conv_module_forward.2} parent=5 // pred_check
      %p748 = pneg %p747
    $region46: #{conv_module_forward.2} parent=5 // pred_check_branch
      %750 = sbr.rel (%p748) target = $region48
    $region47: #{conv_module_forward.2} parent=5 // pred_region
      %s751 = ssub.s32 %s12, 2
      // Predicated region
      $region49: #{conv_module_forward.2} parent=47 // pred_check
        %p752 = pneg %p123
      $region50: #{conv_module_forward.2} parent=47 // pred_check_branch
        %754 = sbr.rel (%p752) target = $region52
      $region51: #{conv_module_forward.2} parent=47 // pred_region
        %s755 = smul.u32 32, %s23
        %p756 = scmp.lt.s32.totalorder %s755, 63
        %s757 = scalar_select %p756, %s755, 63
        %s758 = smul.addr %s757, 8
        %s759 = scalar_lea.vmem %s3, %s758
      $region52: #{conv_module_forward.2} parent=47 // pred_fallthru
        _
      // Predicated region
      $region53: #{conv_module_forward.2} parent=47 // pred_check
        %p760 = pneg %p149
      $region54: #{conv_module_forward.2} parent=47 // pred_check_branch
        %762 = sbr.rel (%p760) target = $region56
      $region55: #{conv_module_forward.2} parent=47 // pred_region
        %p763 = scmp.lt.s32.totalorder %s23, 1
        %s764 = scalar_select %p763, %s23, 1
        %s765 = smul.addr %s764, 8
        %s766 = scalar_lea.vmem %s4, %s765
      $region56: #{conv_module_forward.2} parent=47 // pred_fallthru
        _
      // Predicated region
      $region57: #{conv_module_forward.2} parent=47 // pred_check
        %p767 = pneg %p175
      $region58: #{conv_module_forward.2} parent=47 // pred_check_branch
        %769 = sbr.rel (%p767) target = $region60
      $region59: #{conv_module_forward.2} parent=47 // pred_region
        %p770 = scmp.lt.s32.totalorder %s23, 1
        %s771 = scalar_select %p770, %s23, 1
        %s772 = smul.addr %s771, 8
        %s773 = scalar_lea.vmem %s5, %s772
      $region60: #{conv_module_forward.2} parent=47 // pred_fallthru
        _
    $region48: #{conv_module_forward.2} parent=5 // pred_fallthru
      _
  $region6: #{conv_module_forward.2} parent=0 // loop_footer
    %s16 = sadd.s32 1, %s12
  $region7: #{conv_module_forward.2} parent=0 // loop_footer_branch
    %11 = sbr.rel target = $region3
  $region8: #{conv_module_forward.2} parent=0 // loop_exit
    _

</llo_original>
